<compile_context>
chip_gen: v6e
topology: v6e:2x2x1
jax: 0.10.0
libtpu: 0.0.40
codegen_flags: <defaults>
</compile_context>

<pallas_src>
import jax
import jax.numpy as jnp
from jax.experimental import pallas as pl
from jax.experimental.pallas import tpu as pltpu

# ---------------- small synthetic ViT config ----------------
B = 2              # batch
C = 3              # image channels
IMG = 32           # image side
P = 16             # patch size (like vit-*-patch16-*)
NP = (IMG // P) ** 2      # 4 patches per image
S = NP + 1                # tokens incl. CLS = 5
SP = 8                    # sublane-padded tokens per image
D = 128            # hidden size
H = 4              # attention heads
HD = D // H        # head dim = 32
HSP = H * SP       # stacked-head rows = 32
MLP = 256          # intermediate size
L = 2              # encoder layers
NC = 16            # classifier classes (synthetic; HF model has 1000)
NCP = 128          # lane-padded classifier width (lane-dense output store)
CPP = C * P * P    # flattened patch = 768
EPS = 1e-12        # HF ViT layer_norm_eps
NEG = -1e30


def _layernorm(x, gamma, beta):
    mu = jnp.mean(x, axis=-1, keepdims=True)
    var = jnp.mean((x - mu) ** 2, axis=-1, keepdims=True)
    return (x - mu) * jax.lax.rsqrt(var + EPS) * gamma + beta


# ---------------- fused forward kernel: grid=(B, L) ----------------
def fused_vit_kernel(
    patches_ref, pw_ref, pb_ref, cls_ref, pos_ref,           # embedding (per-image / const)
    amask_ref, hmask_ref,                                     # hoisted layer-invariant masks
    ln1g_ref, ln1b_ref, wqkv_ref, bqkv_ref, wo_ref, bo_ref,   # per-layer (stacked, index l)
    ln2g_ref, ln2b_ref, w1_ref, b1_ref, w2_ref, b2_ref,
    lng_ref, lnb_ref, wc_ref, bc_ref,                         # final LN + classifier
    o_ref,                                                    # (1, NCP) logits (padded)
    acts_ref,                                                 # VMEM scratch (SP, D) f32
):
    l = pl.program_id(1)

    # ---- phase 0 (per image): patch embed (patchify-conv as matmul) + CLS + pos-emb ----
    @pl.when(l == 0)
    def _embed():
        emb = jnp.dot(patches_ref[...].astype(jnp.bfloat16), pw_ref[...],
                      preferred_element_type=jnp.float32) + pb_ref[...]    # (NP, D)
        acts_ref[...] = jnp.zeros((SP, D), jnp.float32)                    # pad rows zeroed
        acts_ref[0:1, :] = cls_ref[...] + pos_ref[0:1, :]                  # CLS token row
        acts_ref[1:1 + NP, :] = emb + pos_ref[1:1 + NP, :]                 # patch token rows

    x = acts_ref[...]                                                      # (SP, D) f32

    # ---- encoder layer l: pre-LN multi-head self-attention (fused over heads) ----
    xn = _layernorm(x, ln1g_ref[...], ln1b_ref[...])
    qkv = jnp.dot(xn.astype(jnp.bfloat16), wqkv_ref[...],
                  preferred_element_type=jnp.float32) + bqkv_ref[...]      # (SP, 3D)
    scale = 1.0 / (HD ** 0.5)
    q = qkv[:, 0:D] * scale                         # lane-aligned 128-wide slices
    k = qkv[:, D:2 * D]
    v = qkv[:, 2 * D:3 * D]

    # Sublane-stack heads: (H*SP, D).  K/V are lane-masked per head (precomputed mask);
    # the scores dot needs masking on only one operand, so Q stays unmasked.
    hm = hmask_ref[...]                                                    # (HSP, D) 0/1 f32
    q_stack = jnp.concatenate([q] * H, axis=0).astype(jnp.bfloat16)        # (HSP, D)
    k_stack = (jnp.concatenate([k] * H, axis=0) * hm).astype(jnp.bfloat16)
    v_stack = (jnp.concatenate([v] * H, axis=0) * hm).astype(jnp.bfloat16)

    # One score dot for all heads; precomputed additive mask kills cross-head blocks and
    # pad-key columns (pad query rows still see real keys -> softmax denom never zero).
    s = jax.lax.dot_general(q_stack, k_stack, (((1,), (1,)), ((), ())),
                            preferred_element_type=jnp.float32)            # (HSP, HSP)
    s = s + amask_ref[...]
    s = s - jnp.max(s, axis=-1, keepdims=True)
    p = jnp.exp(s)
    p = p * pl.reciprocal(jnp.sum(p, axis=-1, keepdims=True), approx=True)

    ctx_stack = jnp.dot(p.astype(jnp.bfloat16), v_stack,
                        preferred_element_type=jnp.float32)                # (HSP, D)
    # Collapse the H sublane row-blocks (8-aligned static slices, no reshape/XLU needed).
    ctx = ctx_stack[0:SP, :]
    for h in range(1, H):
        ctx = ctx + ctx_stack[h * SP:(h + 1) * SP, :]                      # (SP, D)

    attn = jnp.dot(ctx.astype(jnp.bfloat16), wo_ref[...],
                   preferred_element_type=jnp.float32) + bo_ref[...]
    h1 = x + attn                                   # residual (f32)

    # ---- encoder layer l: pre-LN MLP with exact erf-GELU (HF ViT) ----
    hn = _layernorm(h1, ln2g_ref[...], ln2b_ref[...])
    m = jnp.dot(hn.astype(jnp.bfloat16), w1_ref[...],
                preferred_element_type=jnp.float32) + b1_ref[...]
    m = 0.5 * m * (1.0 + jax.lax.erf(m * 0.7071067811865476))
    mlp = jnp.dot(m.astype(jnp.bfloat16), w2_ref[...],
                  preferred_element_type=jnp.float32) + b2_ref[...]
    new_x = h1 + mlp
    acts_ref[...] = new_x

    # ---- final phase (per image): LayerNorm + classifier on the CLS token ----
    @pl.when(l == L - 1)
    def _head():
        cls_tok = new_x[0:1, :]                                            # (1, D)
        xn2 = _layernorm(cls_tok, lng_ref[...], lnb_ref[...])
        o_ref[...] = jnp.dot(xn2.astype(jnp.bfloat16), wc_ref[...],
                             preferred_element_type=jnp.float32) + bc_ref[...]


# ---------------- pallas_call wrapper ----------------
def _const_spec(shape):
    # full-array block, same block at every grid step
    return pl.BlockSpec(shape, lambda b, l: (0,) * len(shape))


def _layer_spec(shape):
    # stacked per-layer block: squeeze the leading L axis, select block l
    return pl.BlockSpec((None,) + tuple(shape[1:]), lambda b, l: (l, 0, 0))


def vit_forward_call(patches3d, p):
    # advisory cost estimate for XLA scheduling around the fused custom call
    flops = int(
        2 * B * NP * CPP * D
        + B * L * (2 * SP * D * 3 * D + 2 * HSP * HSP * D + 2 * HSP * HSP * D
                   + 2 * SP * D * D + 2 * SP * D * MLP + 2 * SP * MLP * D)
        + 2 * B * D * NCP)
    transcendentals = int(B * L * (HSP * HSP + SP * MLP))            # exp + erf
    bytes_accessed = int(
        B * NP * CPP * 4                                             # patches f32
        + B * L * 2 * (D * 3 * D + D * D + 2 * D * MLP)              # bf16 layer weights (re-read per image)
        + B * L * 4 * (3 * D + 6 * D + MLP)                          # f32 layer biases / LN params
        + 2 * (CPP * D + D * NCP) + B * NCP * 4)                     # embed/classifier weights + logits

    return pl.pallas_call(
        fused_vit_kernel,
        grid=(B, L),
        out_shape=jax.ShapeDtypeStruct((B, 1, NCP), jnp.float32),
        in_specs=[
            pl.BlockSpec((None, NP, CPP), lambda b, l: (b, 0, 0)),   # patches (per image)
            _const_spec((CPP, D)),                                   # patch_w (bf16)
            _const_spec((1, D)),                                     # patch_b
            _const_spec((1, D)),                                     # cls
            _const_spec((S, D)),                                     # pos
            _const_spec((HSP, HSP)),                                 # additive attention mask
            _const_spec((HSP, D)),                                   # head-lane mask
            _layer_spec((L, 1, D)), _layer_spec((L, 1, D)),          # ln1 g/b
            _layer_spec((L, D, 3 * D)), _layer_spec((L, 1, 3 * D)),  # wqkv / bqkv
            _layer_spec((L, D, D)), _layer_spec((L, 1, D)),          # wo / bo
            _layer_spec((L, 1, D)), _layer_spec((L, 1, D)),          # ln2 g/b
            _layer_spec((L, D, MLP)), _layer_spec((L, 1, MLP)),      # w1 / b1
            _layer_spec((L, MLP, D)), _layer_spec((L, 1, D)),        # w2 / b2
            _const_spec((1, D)), _const_spec((1, D)),                # final ln g/b
            _const_spec((D, NCP)), _const_spec((1, NCP)),            # classifier w/b
        ],
        out_specs=pl.BlockSpec((None, 1, NCP), lambda b, l: (b, 0, 0)),
        scratch_shapes=[pltpu.VMEM((SP, D), jnp.float32)],
        compiler_params=pltpu.CompilerParams(
            dimension_semantics=("parallel", "arbitrary"),           # batch || across TCs, layer carried
            vmem_limit_bytes=32 * 1024 * 1024),
        cost_estimate=pl.CostEstimate(flops=flops, transcendentals=transcendentals,
                                      bytes_accessed=bytes_accessed),
    )(patches3d, p["patch_w"], p["patch_b"], p["cls"], p["pos"],
      p["attn_mask"], p["head_mask"],
      p["ln1_g"], p["ln1_b"], p["wqkv"], p["bqkv"], p["wo"], p["bo"],
      p["ln2_g"], p["ln2_b"], p["w1"], p["b1"], p["w2"], p["b2"],
      p["ln_g"], p["ln_b"], p["cls_w"], p["cls_b"])


# ---------------- layer-invariant masks (hoisted out of the kernel body) ----------------
def build_masks():
    row = jnp.arange(HSP)
    row_head = row // SP
    col_tok = row % SP
    valid = (row_head[:, None] == row_head[None, :]) & (col_tok[None, :] < S)
    attn_mask = jnp.where(valid, 0.0, NEG).astype(jnp.float32)      # (HSP, HSP)
    lane_head = jnp.arange(D) // HD
    head_mask = (row_head[:, None] == lane_head[None, :]).astype(jnp.float32)  # (HSP, D)
    return attn_mask, head_mask


# ---------------- parameters (deterministic synthetic init) ----------------
def init_params(key):
    # TODO(synk): weights are synthetic (cannot load the pretrained HF checkpoint here).
    keys = iter(jax.random.split(key, 16))

    def wf(shape, scale=0.02):
        return (scale * jax.random.normal(next(keys), shape)).astype(jnp.float32)

    attn_mask, head_mask = build_masks()
    cls_w = jnp.pad(wf((D, NC)), ((0, 0), (0, NCP - NC)))   # lane-pad classifier to 128
    return {
        "patch_w": wf((CPP, D)).astype(jnp.bfloat16),  # conv weight, (c, kh, kw) flat
        "patch_b": jnp.zeros((1, D), jnp.float32),
        "cls": wf((1, D)),
        "pos": wf((S, D)),
        "attn_mask": attn_mask,
        "head_mask": head_mask,
        "ln1_g": jnp.ones((L, 1, D), jnp.float32), "ln1_b": jnp.zeros((L, 1, D), jnp.float32),
        "wqkv": wf((L, D, 3 * D)).astype(jnp.bfloat16),
        "bqkv": jnp.zeros((L, 1, 3 * D), jnp.float32),
        "wo": wf((L, D, D)).astype(jnp.bfloat16),
        "bo": jnp.zeros((L, 1, D), jnp.float32),
        "ln2_g": jnp.ones((L, 1, D), jnp.float32), "ln2_b": jnp.zeros((L, 1, D), jnp.float32),
        "w1": wf((L, D, MLP)).astype(jnp.bfloat16),
        "b1": jnp.zeros((L, 1, MLP), jnp.float32),
        "w2": wf((L, MLP, D)).astype(jnp.bfloat16),
        "b2": jnp.zeros((L, 1, D), jnp.float32),
        "ln_g": jnp.ones((1, D), jnp.float32), "ln_b": jnp.zeros((1, D), jnp.float32),
        "cls_w": cls_w.astype(jnp.bfloat16),
        "cls_b": jnp.zeros((1, NCP), jnp.float32),
    }


# ---------------- forward ----------------
@jax.jit
def vit_forward(x, p):
    # layout: x is NCHW (B, C, H, W). Patchify (glue reshape) to (B, NP, C*P*P),
    # channel-major per patch -- same ordering as the PyTorch conv-kernel flatten.
    xp = (x.reshape(B, C, IMG // P, P, IMG // P, P)
            .transpose(0, 2, 4, 1, 3, 5)
            .reshape(B, NP, CPP))
    logits_padded = vit_forward_call(xp, p)        # (B, 1, NCP), lane-dense store
    return logits_padded.reshape(B, NCP)[:, :NC]


if __name__ == "__main__":
    key = jax.random.PRNGKey(0)
    kx, kp = jax.random.split(key)
    x = jax.random.normal(kx, (B, C, IMG, IMG), dtype=jnp.float32)
    params = init_params(kp)

    logits = vit_forward(x, params)
    jax.block_until_ready(logits)
    assert logits.shape == (B, NC) and logits.dtype == jnp.float32
    assert bool(jnp.all(jnp.isfinite(logits)))
    print("KERNEL_OK")
</pallas_src>

<mosaic_0001>
module attributes {stable_mosaic.version = 11 : i64} {
  func.func @fused_vit_kernel(%arg0: i32, %arg1: i32, %arg2: memref<1x4x768xf32, #tpu.memory_space<vmem>>, %arg3: memref<768x128xbf16, #tpu.memory_space<vmem>>, %arg4: memref<1x128xf32, #tpu.memory_space<vmem>>, %arg5: memref<1x128xf32, #tpu.memory_space<vmem>>, %arg6: memref<5x128xf32, #tpu.memory_space<vmem>>, %arg7: memref<32x32xf32, #tpu.memory_space<vmem>>, %arg8: memref<32x128xf32, #tpu.memory_space<vmem>>, %arg9: memref<1x1x128xf32, #tpu.memory_space<vmem>>, %arg10: memref<1x1x128xf32, #tpu.memory_space<vmem>>, %arg11: memref<1x128x384xbf16, #tpu.memory_space<vmem>>, %arg12: memref<1x1x384xf32, #tpu.memory_space<vmem>>, %arg13: memref<1x128x128xbf16, #tpu.memory_space<vmem>>, %arg14: memref<1x1x128xf32, #tpu.memory_space<vmem>>, %arg15: memref<1x1x128xf32, #tpu.memory_space<vmem>>, %arg16: memref<1x1x128xf32, #tpu.memory_space<vmem>>, %arg17: memref<1x128x256xbf16, #tpu.memory_space<vmem>>, %arg18: memref<1x1x256xf32, #tpu.memory_space<vmem>>, %arg19: memref<1x256x128xbf16, #tpu.memory_space<vmem>>, %arg20: memref<1x1x128xf32, #tpu.memory_space<vmem>>, %arg21: memref<1x128xf32, #tpu.memory_space<vmem>>, %arg22: memref<1x128xf32, #tpu.memory_space<vmem>>, %arg23: memref<128x128xbf16, #tpu.memory_space<vmem>>, %arg24: memref<1x128xf32, #tpu.memory_space<vmem>>, %arg25: memref<1x1x128xf32, #tpu.memory_space<vmem>>, %arg26: memref<8x128xf32, #tpu.memory_space<vmem>>) attributes {dimension_semantics = [#tpu.dimension_semantics<parallel>, #tpu.dimension_semantics<arbitrary>], iteration_bounds = array<i64: 2, 2>, scalar_prefetch = 0 : i64, scratch_operands = 1 : i64, tpu.core_type = #tpu.core_type<tc>, window_params = [{transform_indices = @transform_0, window_bounds = array<i64: 1, 4, 768>}, {pipeline_mode = #tpu.pipeline_mode<synchronous>, transform_indices = @transform_1, window_bounds = array<i64: 768, 128>}, {pipeline_mode = #tpu.pipeline_mode<synchronous>, transform_indices = @transform_2, window_bounds = array<i64: 1, 128>}, {pipeline_mode = #tpu.pipeline_mode<synchronous>, transform_indices = @transform_3, window_bounds = array<i64: 1, 128>}, {pipeline_mode = #tpu.pipeline_mode<synchronous>, transform_indices = @transform_4, window_bounds = array<i64: 5, 128>}, {pipeline_mode = #tpu.pipeline_mode<synchronous>, transform_indices = @transform_5, window_bounds = array<i64: 32, 32>}, {pipeline_mode = #tpu.pipeline_mode<synchronous>, transform_indices = @transform_6, window_bounds = array<i64: 32, 128>}, {transform_indices = @transform_7, window_bounds = array<i64: 1, 1, 128>}, {transform_indices = @transform_8, window_bounds = array<i64: 1, 1, 128>}, {transform_indices = @transform_9, window_bounds = array<i64: 1, 128, 384>}, {transform_indices = @transform_10, window_bounds = array<i64: 1, 1, 384>}, {transform_indices = @transform_11, window_bounds = array<i64: 1, 128, 128>}, {transform_indices = @transform_12, window_bounds = array<i64: 1, 1, 128>}, {transform_indices = @transform_13, window_bounds = array<i64: 1, 1, 128>}, {transform_indices = @transform_14, window_bounds = array<i64: 1, 1, 128>}, {transform_indices = @transform_15, window_bounds = array<i64: 1, 128, 256>}, {transform_indices = @transform_16, window_bounds = array<i64: 1, 1, 256>}, {transform_indices = @transform_17, window_bounds = array<i64: 1, 256, 128>}, {transform_indices = @transform_18, window_bounds = array<i64: 1, 1, 128>}, {pipeline_mode = #tpu.pipeline_mode<synchronous>, transform_indices = @transform_19, window_bounds = array<i64: 1, 128>}, {pipeline_mode = #tpu.pipeline_mode<synchronous>, transform_indices = @transform_20, window_bounds = array<i64: 1, 128>}, {pipeline_mode = #tpu.pipeline_mode<synchronous>, transform_indices = @transform_21, window_bounds = array<i64: 128, 128>}, {pipeline_mode = #tpu.pipeline_mode<synchronous>, transform_indices = @transform_22, window_bounds = array<i64: 1, 128>}, {transform_indices = @transform_23, window_bounds = array<i64: 1, 1, 128>}]} {
    %c0_i32 = arith.constant 0 : i32
    %0 = arith.cmpi eq, %arg1, %c0_i32 : i32
    %1 = arith.extui %0 : i1 to i32
    %c0_i32_0 = arith.constant 0 : i32
    %2 = arith.cmpi ne, %1, %c0_i32_0 : i32
    scf.if %2 {
      %c0_66 = arith.constant 0 : index
      %c0_67 = arith.constant 0 : index
      %c0_68 = arith.constant 0 : index
      %138 = vector.load %arg2[%c0_66, %c0_67, %c0_68] : memref<1x4x768xf32, #tpu.memory_space<vmem>>, vector<1x4x768xf32>
      %139 = vector.shape_cast %138 : vector<1x4x768xf32> to vector<4x768xf32>
      %140 = arith.truncf %139 : vector<4x768xf32> to vector<4x768xbf16>
      %c0_69 = arith.constant 0 : index
      %c0_70 = arith.constant 0 : index
      %141 = vector.load %arg3[%c0_69, %c0_70] : memref<768x128xbf16, #tpu.memory_space<vmem>>, vector<768x128xbf16>
      %cst_71 = arith.constant dense<0.000000e+00> : vector<4x128xf32>
      %142 = tpu.matmul %140, %141, %cst_71 {dimension_numbers = #tpu.dot_dimension_numbers<[1], [0], [0], [1], [0, 0, 1, 1], [], []>} : vector<4x768xbf16>, vector<768x128xbf16>, vector<4x128xf32> -> vector<4x128xf32>
      %c0_72 = arith.constant 0 : index
      %c0_73 = arith.constant 0 : index
      %143 = vector.load %arg4[%c0_72, %c0_73] : memref<1x128xf32, #tpu.memory_space<vmem>>, vector<1x128xf32>
      %144 = vector.broadcast %143 : vector<1x128xf32> to vector<4x128xf32>
      %145 = arith.addf %142, %144 : vector<4x128xf32>
      %cst_74 = arith.constant 0.000000e+00 : f32
      %146 = vector.broadcast %cst_74 : f32 to vector<8x128xf32>
      %c0_75 = arith.constant 0 : index
      %c0_76 = arith.constant 0 : index
      %147 = vector.load %arg26[%c0_75, %c0_76] : memref<8x128xf32, #tpu.memory_space<vmem>>, vector<8x128xf32>
      tpu.vector_store %arg26[%c0_75, %c0_76], %146 {strides = array<i32>} : memref<8x128xf32, #tpu.memory_space<vmem>>, vector<8x128xf32>,
      %c0_77 = arith.constant 0 : index
      %c0_78 = arith.constant 0 : index
      %148 = vector.load %arg5[%c0_77, %c0_78] : memref<1x128xf32, #tpu.memory_space<vmem>>, vector<1x128xf32>
      %c0_79 = arith.constant 0 : index
      %c0_80 = arith.constant 0 : index
      %149 = vector.load %arg6[%c0_79, %c0_80] : memref<5x128xf32, #tpu.memory_space<vmem>>, vector<1x128xf32>
      %150 = arith.addf %148, %149 : vector<1x128xf32>
      %c0_81 = arith.constant 0 : index
      %c0_82 = arith.constant 0 : index
      %151 = vector.load %arg26[%c0_81, %c0_82] : memref<8x128xf32, #tpu.memory_space<vmem>>, vector<1x128xf32>
      tpu.vector_store %arg26[%c0_81, %c0_82], %150 {strides = array<i32>} : memref<8x128xf32, #tpu.memory_space<vmem>>, vector<1x128xf32>,
      %c1 = arith.constant 1 : index
      %c0_83 = arith.constant 0 : index
      %152 = vector.load %arg6[%c1, %c0_83] : memref<5x128xf32, #tpu.memory_space<vmem>>, vector<4x128xf32>
      %153 = arith.addf %145, %152 : vector<4x128xf32>
      %c1_84 = arith.constant 1 : index
      %c0_85 = arith.constant 0 : index
      %154 = vector.load %arg26[%c1_84, %c0_85] : memref<8x128xf32, #tpu.memory_space<vmem>>, vector<4x128xf32>
      tpu.vector_store %arg26[%c1_84, %c0_85], %153 {strides = array<i32>} : memref<8x128xf32, #tpu.memory_space<vmem>>, vector<4x128xf32>,
    } else {
    }
    %c0 = arith.constant 0 : index
    %c0_1 = arith.constant 0 : index
    %3 = vector.load %arg26[%c0, %c0_1] : memref<8x128xf32, #tpu.memory_space<vmem>>, vector<8x128xf32>
    %c0_2 = arith.constant 0 : index
    %c0_3 = arith.constant 0 : index
    %c0_4 = arith.constant 0 : index
    %4 = vector.load %arg9[%c0_2, %c0_3, %c0_4] : memref<1x1x128xf32, #tpu.memory_space<vmem>>, vector<1x1x128xf32>
    %5 = vector.shape_cast %4 : vector<1x1x128xf32> to vector<1x128xf32>
    %c0_5 = arith.constant 0 : index
    %c0_6 = arith.constant 0 : index
    %c0_7 = arith.constant 0 : index
    %6 = vector.load %arg10[%c0_5, %c0_6, %c0_7] : memref<1x1x128xf32, #tpu.memory_space<vmem>>, vector<1x1x128xf32>
    %7 = vector.shape_cast %6 : vector<1x1x128xf32> to vector<1x128xf32>
    %cst = arith.constant dense<0.000000e+00> : vector<8xf32>
    %8 = vector.multi_reduction <add>, %3, %cst [1] : vector<8x128xf32> to vector<8xf32>
    %9 = vector.shape_cast %8 : vector<8xf32> to vector<8x1xf32>
    %cst_8 = arith.constant 1.280000e+02 : f32
    %10 = vector.broadcast %cst_8 : f32 to vector<8x1xf32>
    %11 = arith.divf %9, %10 : vector<8x1xf32>
    %12 = vector.broadcast %11 : vector<8x1xf32> to vector<8x128xf32>
    %13 = arith.subf %3, %12 : vector<8x128xf32>
    %14 = arith.mulf %13, %13 : vector<8x128xf32>
    %cst_9 = arith.constant dense<0.000000e+00> : vector<8xf32>
    %15 = vector.multi_reduction <add>, %14, %cst_9 [1] : vector<8x128xf32> to vector<8xf32>
    %16 = vector.shape_cast %15 : vector<8xf32> to vector<8x1xf32>
    %cst_10 = arith.constant 1.280000e+02 : f32
    %17 = vector.broadcast %cst_10 : f32 to vector<8x1xf32>
    %18 = arith.divf %16, %17 : vector<8x1xf32>
    %19 = vector.broadcast %11 : vector<8x1xf32> to vector<8x128xf32>
    %20 = arith.subf %3, %19 : vector<8x128xf32>
    %cst_11 = arith.constant 9.99999996E-13 : f32
    %21 = vector.broadcast %cst_11 : f32 to vector<8x1xf32>
    %22 = arith.addf %18, %21 : vector<8x1xf32>
    %23 = math.rsqrt %22 : vector<8x1xf32>
    %24 = vector.broadcast %23 : vector<8x1xf32> to vector<8x128xf32>
    %25 = arith.mulf %20, %24 : vector<8x128xf32>
    %26 = vector.broadcast %5 : vector<1x128xf32> to vector<8x128xf32>
    %27 = arith.mulf %25, %26 : vector<8x128xf32>
    %28 = vector.broadcast %7 : vector<1x128xf32> to vector<8x128xf32>
    %29 = arith.addf %27, %28 : vector<8x128xf32>
    %30 = arith.truncf %29 : vector<8x128xf32> to vector<8x128xbf16>
    %c0_12 = arith.constant 0 : index
    %c0_13 = arith.constant 0 : index
    %c0_14 = arith.constant 0 : index
    %31 = vector.load %arg11[%c0_12, %c0_13, %c0_14] : memref<1x128x384xbf16, #tpu.memory_space<vmem>>, vector<1x128x384xbf16>
    %32 = vector.shape_cast %31 : vector<1x128x384xbf16> to vector<128x384xbf16>
    %cst_15 = arith.constant dense<0.000000e+00> : vector<8x384xf32>
    %33 = tpu.matmul %30, %32, %cst_15 {dimension_numbers = #tpu.dot_dimension_numbers<[1], [0], [0], [1], [0, 0, 1, 1], [], []>} : vector<8x128xbf16>, vector<128x384xbf16>, vector<8x384xf32> -> vector<8x384xf32>
    %c0_16 = arith.constant 0 : index
    %c0_17 = arith.constant 0 : index
    %c0_18 = arith.constant 0 : index
    %34 = vector.load %arg12[%c0_16, %c0_17, %c0_18] : memref<1x1x384xf32, #tpu.memory_space<vmem>>, vector<1x1x384xf32>
    %35 = vector.shape_cast %34 : vector<1x1x384xf32> to vector<1x384xf32>
    %36 = vector.broadcast %35 : vector<1x384xf32> to vector<8x384xf32>
    %37 = arith.addf %33, %36 : vector<8x384xf32>
    %38 = vector.extract_strided_slice %37 {offsets = [0, 0], sizes = [8, 128], strides = [1, 1]} : vector<8x384xf32> to vector<8x128xf32>
    %cst_19 = arith.constant 0.176776692 : f32
    %39 = vector.broadcast %cst_19 : f32 to vector<8x128xf32>
    %40 = arith.mulf %38, %39 : vector<8x128xf32>
    %41 = vector.extract_strided_slice %37 {offsets = [0, 128], sizes = [8, 128], strides = [1, 1]} : vector<8x384xf32> to vector<8x128xf32>
    %42 = vector.extract_strided_slice %37 {offsets = [0, 256], sizes = [8, 128], strides = [1, 1]} : vector<8x384xf32> to vector<8x128xf32>
    %c0_20 = arith.constant 0 : index
    %c0_21 = arith.constant 0 : index
    %43 = vector.load %arg8[%c0_20, %c0_21] : memref<32x128xf32, #tpu.memory_space<vmem>>, vector<32x128xf32>
    %44 = tpu.concatenate %40, %40, %40, %40 in 0 : vector<8x128xf32>, vector<8x128xf32>, vector<8x128xf32>, vector<8x128xf32> -> vector<32x128xf32>
    %45 = arith.truncf %44 : vector<32x128xf32> to vector<32x128xbf16>
    %46 = tpu.concatenate %41, %41, %41, %41 in 0 : vector<8x128xf32>, vector<8x128xf32>, vector<8x128xf32>, vector<8x128xf32> -> vector<32x128xf32>
    %47 = arith.mulf %46, %43 : vector<32x128xf32>
    %48 = arith.truncf %47 : vector<32x128xf32> to vector<32x128xbf16>
    %49 = tpu.concatenate %42, %42, %42, %42 in 0 : vector<8x128xf32>, vector<8x128xf32>, vector<8x128xf32>, vector<8x128xf32> -> vector<32x128xf32>
    %50 = arith.mulf %49, %43 : vector<32x128xf32>
    %51 = arith.truncf %50 : vector<32x128xf32> to vector<32x128xbf16>
    %cst_22 = arith.constant dense<0.000000e+00> : vector<32x32xf32>
    %52 = tpu.matmul %45, %48, %cst_22 {dimension_numbers = #tpu.dot_dimension_numbers<[1], [1], [0], [0], [0, 0, 1, 0], [], []>} : vector<32x128xbf16>, vector<32x128xbf16>, vector<32x32xf32> -> vector<32x32xf32>
    %c0_23 = arith.constant 0 : index
    %c0_24 = arith.constant 0 : index
    %53 = vector.load %arg7[%c0_23, %c0_24] : memref<32x32xf32, #tpu.memory_space<vmem>>, vector<32x32xf32>
    %54 = arith.addf %52, %53 : vector<32x32xf32>
    %cst_25 = arith.constant dense<0xFF800000> : vector<32xf32>
    %55 = vector.multi_reduction <maximumf>, %54, %cst_25 [1] : vector<32x32xf32> to vector<32xf32>
    %56 = vector.shape_cast %55 : vector<32xf32> to vector<32x1xf32>
    %57 = vector.broadcast %56 : vector<32x1xf32> to vector<32x32xf32>
    %58 = arith.subf %54, %57 : vector<32x32xf32>
    %59 = math.exp %58 : vector<32x32xf32>
    %cst_26 = arith.constant dense<0.000000e+00> : vector<32xf32>
    %60 = vector.multi_reduction <add>, %59, %cst_26 [1] : vector<32x32xf32> to vector<32xf32>
    %61 = vector.shape_cast %60 : vector<32xf32> to vector<32x1xf32>
    %62 = tpu.reciprocal %61 {approx = true} : vector<32x1xf32> -> vector<32x1xf32>
    %63 = vector.broadcast %62 : vector<32x1xf32> to vector<32x32xf32>
    %64 = arith.mulf %59, %63 : vector<32x32xf32>
    %65 = arith.truncf %64 : vector<32x32xf32> to vector<32x32xbf16>
    %cst_27 = arith.constant dense<0.000000e+00> : vector<32x128xf32>
    %66 = tpu.matmul %65, %51, %cst_27 {dimension_numbers = #tpu.dot_dimension_numbers<[1], [0], [0], [1], [0, 0, 1, 1], [], []>} : vector<32x32xbf16>, vector<32x128xbf16>, vector<32x128xf32> -> vector<32x128xf32>
    %67 = vector.extract_strided_slice %66 {offsets = [0, 0], sizes = [8, 128], strides = [1, 1]} : vector<32x128xf32> to vector<8x128xf32>
    %68 = vector.extract_strided_slice %66 {offsets = [8, 0], sizes = [8, 128], strides = [1, 1]} : vector<32x128xf32> to vector<8x128xf32>
    %69 = arith.addf %67, %68 : vector<8x128xf32>
    %70 = vector.extract_strided_slice %66 {offsets = [16, 0], sizes = [8, 128], strides = [1, 1]} : vector<32x128xf32> to vector<8x128xf32>
    %71 = arith.addf %69, %70 : vector<8x128xf32>
    %72 = vector.extract_strided_slice %66 {offsets = [24, 0], sizes = [8, 128], strides = [1, 1]} : vector<32x128xf32> to vector<8x128xf32>
    %73 = arith.addf %71, %72 : vector<8x128xf32>
    %74 = arith.truncf %73 : vector<8x128xf32> to vector<8x128xbf16>
    %c0_28 = arith.constant 0 : index
    %c0_29 = arith.constant 0 : index
    %c0_30 = arith.constant 0 : index
    %75 = vector.load %arg13[%c0_28, %c0_29, %c0_30] : memref<1x128x128xbf16, #tpu.memory_space<vmem>>, vector<1x128x128xbf16>
    %76 = vector.shape_cast %75 : vector<1x128x128xbf16> to vector<128x128xbf16>
    %cst_31 = arith.constant dense<0.000000e+00> : vector<8x128xf32>
    %77 = tpu.matmul %74, %76, %cst_31 {dimension_numbers = #tpu.dot_dimension_numbers<[1], [0], [0], [1], [0, 0, 1, 1], [], []>} : vector<8x128xbf16>, vector<128x128xbf16>, vector<8x128xf32> -> vector<8x128xf32>
    %c0_32 = arith.constant 0 : index
    %c0_33 = arith.constant 0 : index
    %c0_34 = arith.constant 0 : index
    %78 = vector.load %arg14[%c0_32, %c0_33, %c0_34] : memref<1x1x128xf32, #tpu.memory_space<vmem>>, vector<1x1x128xf32>
    %79 = vector.shape_cast %78 : vector<1x1x128xf32> to vector<1x128xf32>
    %80 = vector.broadcast %79 : vector<1x128xf32> to vector<8x128xf32>
    %81 = arith.addf %77, %80 : vector<8x128xf32>
    %82 = arith.addf %3, %81 : vector<8x128xf32>
    %c0_35 = arith.constant 0 : index
    %c0_36 = arith.constant 0 : index
    %c0_37 = arith.constant 0 : index
    %83 = vector.load %arg15[%c0_35, %c0_36, %c0_37] : memref<1x1x128xf32, #tpu.memory_space<vmem>>, vector<1x1x128xf32>
    %84 = vector.shape_cast %83 : vector<1x1x128xf32> to vector<1x128xf32>
    %c0_38 = arith.constant 0 : index
    %c0_39 = arith.constant 0 : index
    %c0_40 = arith.constant 0 : index
    %85 = vector.load %arg16[%c0_38, %c0_39, %c0_40] : memref<1x1x128xf32, #tpu.memory_space<vmem>>, vector<1x1x128xf32>
    %86 = vector.shape_cast %85 : vector<1x1x128xf32> to vector<1x128xf32>
    %cst_41 = arith.constant dense<0.000000e+00> : vector<8xf32>
    %87 = vector.multi_reduction <add>, %82, %cst_41 [1] : vector<8x128xf32> to vector<8xf32>
    %88 = vector.shape_cast %87 : vector<8xf32> to vector<8x1xf32>
    %cst_42 = arith.constant 1.280000e+02 : f32
    %89 = vector.broadcast %cst_42 : f32 to vector<8x1xf32>
    %90 = arith.divf %88, %89 : vector<8x1xf32>
    %91 = vector.broadcast %90 : vector<8x1xf32> to vector<8x128xf32>
    %92 = arith.subf %82, %91 : vector<8x128xf32>
    %93 = arith.mulf %92, %92 : vector<8x128xf32>
    %cst_43 = arith.constant dense<0.000000e+00> : vector<8xf32>
    %94 = vector.multi_reduction <add>, %93, %cst_43 [1] : vector<8x128xf32> to vector<8xf32>
    %95 = vector.shape_cast %94 : vector<8xf32> to vector<8x1xf32>
    %cst_44 = arith.constant 1.280000e+02 : f32
    %96 = vector.broadcast %cst_44 : f32 to vector<8x1xf32>
    %97 = arith.divf %95, %96 : vector<8x1xf32>
    %98 = vector.broadcast %90 : vector<8x1xf32> to vector<8x128xf32>
    %99 = arith.subf %82, %98 : vector<8x128xf32>
    %cst_45 = arith.constant 9.99999996E-13 : f32
    %100 = vector.broadcast %cst_45 : f32 to vector<8x1xf32>
    %101 = arith.addf %97, %100 : vector<8x1xf32>
    %102 = math.rsqrt %101 : vector<8x1xf32>
    %103 = vector.broadcast %102 : vector<8x1xf32> to vector<8x128xf32>
    %104 = arith.mulf %99, %103 : vector<8x128xf32>
    %105 = vector.broadcast %84 : vector<1x128xf32> to vector<8x128xf32>
    %106 = arith.mulf %104, %105 : vector<8x128xf32>
    %107 = vector.broadcast %86 : vector<1x128xf32> to vector<8x128xf32>
    %108 = arith.addf %106, %107 : vector<8x128xf32>
    %109 = arith.truncf %108 : vector<8x128xf32> to vector<8x128xbf16>
    %c0_46 = arith.constant 0 : index
    %c0_47 = arith.constant 0 : index
    %c0_48 = arith.constant 0 : index
    %110 = vector.load %arg17[%c0_46, %c0_47, %c0_48] : memref<1x128x256xbf16, #tpu.memory_space<vmem>>, vector<1x128x256xbf16>
    %111 = vector.shape_cast %110 : vector<1x128x256xbf16> to vector<128x256xbf16>
    %cst_49 = arith.constant dense<0.000000e+00> : vector<8x256xf32>
    %112 = tpu.matmul %109, %111, %cst_49 {dimension_numbers = #tpu.dot_dimension_numbers<[1], [0], [0], [1], [0, 0, 1, 1], [], []>} : vector<8x128xbf16>, vector<128x256xbf16>, vector<8x256xf32> -> vector<8x256xf32>
    %c0_50 = arith.constant 0 : index
    %c0_51 = arith.constant 0 : index
    %c0_52 = arith.constant 0 : index
    %113 = vector.load %arg18[%c0_50, %c0_51, %c0_52] : memref<1x1x256xf32, #tpu.memory_space<vmem>>, vector<1x1x256xf32>
    %114 = vector.shape_cast %113 : vector<1x1x256xf32> to vector<1x256xf32>
    %115 = vector.broadcast %114 : vector<1x256xf32> to vector<8x256xf32>
    %116 = arith.addf %112, %115 : vector<8x256xf32>
    %cst_53 = arith.constant 5.000000e-01 : f32
    %117 = vector.broadcast %cst_53 : f32 to vector<8x256xf32>
    %118 = arith.mulf %117, %116 : vector<8x256xf32>
    %cst_54 = arith.constant 0.707106769 : f32
    %119 = vector.broadcast %cst_54 : f32 to vector<8x256xf32>
    %120 = arith.mulf %116, %119 : vector<8x256xf32>
    %121 = math.erf %120 : vector<8x256xf32>
    %cst_55 = arith.constant 1.000000e+00 : f32
    %122 = vector.broadcast %cst_55 : f32 to vector<8x256xf32>
    %123 = arith.addf %122, %121 : vector<8x256xf32>
    %124 = arith.mulf %118, %123 : vector<8x256xf32>
    %125 = arith.truncf %124 : vector<8x256xf32> to vector<8x256xbf16>
    %c0_56 = arith.constant 0 : index
    %c0_57 = arith.constant 0 : index
    %c0_58 = arith.constant 0 : index
    %126 = vector.load %arg19[%c0_56, %c0_57, %c0_58] : memref<1x256x128xbf16, #tpu.memory_space<vmem>>, vector<1x256x128xbf16>
    %127 = vector.shape_cast %126 : vector<1x256x128xbf16> to vector<256x128xbf16>
    %cst_59 = arith.constant dense<0.000000e+00> : vector<8x128xf32>
    %128 = tpu.matmul %125, %127, %cst_59 {dimension_numbers = #tpu.dot_dimension_numbers<[1], [0], [0], [1], [0, 0, 1, 1], [], []>} : vector<8x256xbf16>, vector<256x128xbf16>, vector<8x128xf32> -> vector<8x128xf32>
    %c0_60 = arith.constant 0 : index
    %c0_61 = arith.constant 0 : index
    %c0_62 = arith.constant 0 : index
    %129 = vector.load %arg20[%c0_60, %c0_61, %c0_62] : memref<1x1x128xf32, #tpu.memory_space<vmem>>, vector<1x1x128xf32>
    %130 = vector.shape_cast %129 : vector<1x1x128xf32> to vector<1x128xf32>
    %131 = vector.broadcast %130 : vector<1x128xf32> to vector<8x128xf32>
    %132 = arith.addf %128, %131 : vector<8x128xf32>
    %133 = arith.addf %82, %132 : vector<8x128xf32>
    %c0_63 = arith.constant 0 : index
    %c0_64 = arith.constant 0 : index
    %134 = vector.load %arg26[%c0_63, %c0_64] : memref<8x128xf32, #tpu.memory_space<vmem>>, vector<8x128xf32>
    tpu.vector_store %arg26[%c0_63, %c0_64], %133 {strides = array<i32>} : memref<8x128xf32, #tpu.memory_space<vmem>>, vector<8x128xf32>,
    %c1_i32 = arith.constant 1 : i32
    %135 = arith.cmpi eq, %arg1, %c1_i32 : i32
    %136 = arith.extui %135 : i1 to i32
    %c0_i32_65 = arith.constant 0 : i32
    %137 = arith.cmpi ne, %136, %c0_i32_65 : i32
    scf.if %137 {
      %138 = vector.extract_strided_slice %133 {offsets = [0, 0], sizes = [1, 128], strides = [1, 1]} : vector<8x128xf32> to vector<1x128xf32>
      %c0_66 = arith.constant 0 : index
      %c0_67 = arith.constant 0 : index
      %139 = vector.load %arg21[%c0_66, %c0_67] : memref<1x128xf32, #tpu.memory_space<vmem>>, vector<1x128xf32>
      %c0_68 = arith.constant 0 : index
      %c0_69 = arith.constant 0 : index
      %140 = vector.load %arg22[%c0_68, %c0_69] : memref<1x128xf32, #tpu.memory_space<vmem>>, vector<1x128xf32>
      %cst_70 = arith.constant dense<0.000000e+00> : vector<1xf32>
      %141 = vector.multi_reduction <add>, %138, %cst_70 [1] : vector<1x128xf32> to vector<1xf32>
      %142 = vector.shape_cast %141 : vector<1xf32> to vector<1x1xf32>
      %cst_71 = arith.constant 1.280000e+02 : f32
      %143 = vector.broadcast %cst_71 : f32 to vector<1x1xf32>
      %144 = arith.divf %142, %143 : vector<1x1xf32>
      %145 = vector.broadcast %144 : vector<1x1xf32> to vector<1x128xf32>
      %146 = arith.subf %138, %145 : vector<1x128xf32>
      %147 = arith.mulf %146, %146 : vector<1x128xf32>
      %cst_72 = arith.constant dense<0.000000e+00> : vector<1xf32>
      %148 = vector.multi_reduction <add>, %147, %cst_72 [1] : vector<1x128xf32> to vector<1xf32>
      %149 = vector.shape_cast %148 : vector<1xf32> to vector<1x1xf32>
      %cst_73 = arith.constant 1.280000e+02 : f32
      %150 = vector.broadcast %cst_73 : f32 to vector<1x1xf32>
      %151 = arith.divf %149, %150 : vector<1x1xf32>
      %152 = vector.broadcast %144 : vector<1x1xf32> to vector<1x128xf32>
      %153 = arith.subf %138, %152 : vector<1x128xf32>
      %cst_74 = arith.constant 9.99999996E-13 : f32
      %154 = vector.broadcast %cst_74 : f32 to vector<1x1xf32>
      %155 = arith.addf %151, %154 : vector<1x1xf32>
      %156 = math.rsqrt %155 : vector<1x1xf32>
      %157 = vector.broadcast %156 : vector<1x1xf32> to vector<1x128xf32>
      %158 = arith.mulf %153, %157 : vector<1x128xf32>
      %159 = arith.mulf %158, %139 : vector<1x128xf32>
      %160 = arith.addf %159, %140 : vector<1x128xf32>
      %161 = arith.truncf %160 : vector<1x128xf32> to vector<1x128xbf16>
      %c0_75 = arith.constant 0 : index
      %c0_76 = arith.constant 0 : index
      %162 = vector.load %arg23[%c0_75, %c0_76] : memref<128x128xbf16, #tpu.memory_space<vmem>>, vector<128x128xbf16>
      %cst_77 = arith.constant dense<0.000000e+00> : vector<1x128xf32>
      %163 = tpu.matmul %161, %162, %cst_77 {dimension_numbers = #tpu.dot_dimension_numbers<[1], [0], [0], [1], [0, 0, 1, 1], [], []>} : vector<1x128xbf16>, vector<128x128xbf16>, vector<1x128xf32> -> vector<1x128xf32>
      %c0_78 = arith.constant 0 : index
      %c0_79 = arith.constant 0 : index
      %164 = vector.load %arg24[%c0_78, %c0_79] : memref<1x128xf32, #tpu.memory_space<vmem>>, vector<1x128xf32>
      %165 = arith.addf %163, %164 : vector<1x128xf32>
      %c0_80 = arith.constant 0 : index
      %c0_81 = arith.constant 0 : index
      %c0_82 = arith.constant 0 : index
      %166 = vector.load %arg25[%c0_80, %c0_81, %c0_82] : memref<1x1x128xf32, #tpu.memory_space<vmem>>, vector<1x1x128xf32>
      %167 = vector.shape_cast %166 : vector<1x1x128xf32> to vector<1x128xf32>
      %168 = vector.shape_cast %165 : vector<1x128xf32> to vector<1x1x128xf32>
      tpu.vector_store %arg25[%c0_80, %c0_81, %c0_82], %168 {strides = array<i32>} : memref<1x1x128xf32, #tpu.memory_space<vmem>>, vector<1x1x128xf32>,
    } else {
    }
    return
  }
  func.func @transform_0(%arg0: i32, %arg1: i32) -> (i32, i32, i32) {
    %c0_i32 = arith.constant 0 : i32
    %c0_i32_0 = arith.constant 0 : i32
    %c0_i32_1 = arith.constant 0 : i32
    return %arg0, %c0_i32, %c0_i32_0 : i32, i32, i32
  }
  func.func @transform_1(%arg0: i32, %arg1: i32) -> (i32, i32) {
    %c0_i32 = arith.constant 0 : i32
    %c0_i32_0 = arith.constant 0 : i32
    %c0_i32_1 = arith.constant 0 : i32
    return %c0_i32, %c0_i32_0 : i32, i32
  }
  func.func @transform_2(%arg0: i32, %arg1: i32) -> (i32, i32) {
    %c0_i32 = arith.constant 0 : i32
    %c0_i32_0 = arith.constant 0 : i32
    %c0_i32_1 = arith.constant 0 : i32
    return %c0_i32, %c0_i32_0 : i32, i32
  }
  func.func @transform_3(%arg0: i32, %arg1: i32) -> (i32, i32) {
    %c0_i32 = arith.constant 0 : i32
    %c0_i32_0 = arith.constant 0 : i32
    %c0_i32_1 = arith.constant 0 : i32
    return %c0_i32, %c0_i32_0 : i32, i32
  }
  func.func @transform_4(%arg0: i32, %arg1: i32) -> (i32, i32) {
    %c0_i32 = arith.constant 0 : i32
    %c0_i32_0 = arith.constant 0 : i32
    %c0_i32_1 = arith.constant 0 : i32
    return %c0_i32, %c0_i32_0 : i32, i32
  }
  func.func @transform_5(%arg0: i32, %arg1: i32) -> (i32, i32) {
    %c0_i32 = arith.constant 0 : i32
    %c0_i32_0 = arith.constant 0 : i32
    %c0_i32_1 = arith.constant 0 : i32
    return %c0_i32, %c0_i32_0 : i32, i32
  }
  func.func @transform_6(%arg0: i32, %arg1: i32) -> (i32, i32) {
    %c0_i32 = arith.constant 0 : i32
    %c0_i32_0 = arith.constant 0 : i32
    %c0_i32_1 = arith.constant 0 : i32
    return %c0_i32, %c0_i32_0 : i32, i32
  }
  func.func @transform_7(%arg0: i32, %arg1: i32) -> (i32, i32, i32) {
    %c0_i32 = arith.constant 0 : i32
    %c0_i32_0 = arith.constant 0 : i32
    %c0_i32_1 = arith.constant 0 : i32
    return %arg1, %c0_i32, %c0_i32_0 : i32, i32, i32
  }
  func.func @transform_8(%arg0: i32, %arg1: i32) -> (i32, i32, i32) {
    %c0_i32 = arith.constant 0 : i32
    %c0_i32_0 = arith.constant 0 : i32
    %c0_i32_1 = arith.constant 0 : i32
    return %arg1, %c0_i32, %c0_i32_0 : i32, i32, i32
  }
  func.func @transform_9(%arg0: i32, %arg1: i32) -> (i32, i32, i32) {
    %c0_i32 = arith.constant 0 : i32
    %c0_i32_0 = arith.constant 0 : i32
    %c0_i32_1 = arith.constant 0 : i32
    return %arg1, %c0_i32, %c0_i32_0 : i32, i32, i32
  }
  func.func @transform_10(%arg0: i32, %arg1: i32) -> (i32, i32, i32) {
    %c0_i32 = arith.constant 0 : i32
    %c0_i32_0 = arith.constant 0 : i32
    %c0_i32_1 = arith.constant 0 : i32
    return %arg1, %c0_i32, %c0_i32_0 : i32, i32, i32
  }
  func.func @transform_11(%arg0: i32, %arg1: i32) -> (i32, i32, i32) {
    %c0_i32 = arith.constant 0 : i32
    %c0_i32_0 = arith.constant 0 : i32
    %c0_i32_1 = arith.constant 0 : i32
    return %arg1, %c0_i32, %c0_i32_0 : i32, i32, i32
  }
  func.func @transform_12(%arg0: i32, %arg1: i32) -> (i32, i32, i32) {
    %c0_i32 = arith.constant 0 : i32
    %c0_i32_0 = arith.constant 0 : i32
    %c0_i32_1 = arith.constant 0 : i32
    return %arg1, %c0_i32, %c0_i32_0 : i32, i32, i32
  }
  func.func @transform_13(%arg0: i32, %arg1: i32) -> (i32, i32, i32) {
    %c0_i32 = arith.constant 0 : i32
    %c0_i32_0 = arith.constant 0 : i32
    %c0_i32_1 = arith.constant 0 : i32
    return %arg1, %c0_i32, %c0_i32_0 : i32, i32, i32
  }
  func.func @transform_14(%arg0: i32, %arg1: i32) -> (i32, i32, i32) {
    %c0_i32 = arith.constant 0 : i32
    %c0_i32_0 = arith.constant 0 : i32
    %c0_i32_1 = arith.constant 0 : i32
    return %arg1, %c0_i32, %c0_i32_0 : i32, i32, i32
  }
  func.func @transform_15(%arg0: i32, %arg1: i32) -> (i32, i32, i32) {
    %c0_i32 = arith.constant 0 : i32
    %c0_i32_0 = arith.constant 0 : i32
    %c0_i32_1 = arith.constant 0 : i32
    return %arg1, %c0_i32, %c0_i32_0 : i32, i32, i32
  }
  func.func @transform_16(%arg0: i32, %arg1: i32) -> (i32, i32, i32) {
    %c0_i32 = arith.constant 0 : i32
    %c0_i32_0 = arith.constant 0 : i32
    %c0_i32_1 = arith.constant 0 : i32
    return %arg1, %c0_i32, %c0_i32_0 : i32, i32, i32
  }
  func.func @transform_17(%arg0: i32, %arg1: i32) -> (i32, i32, i32) {
    %c0_i32 = arith.constant 0 : i32
    %c0_i32_0 = arith.constant 0 : i32
    %c0_i32_1 = arith.constant 0 : i32
    return %arg1, %c0_i32, %c0_i32_0 : i32, i32, i32
  }
  func.func @transform_18(%arg0: i32, %arg1: i32) -> (i32, i32, i32) {
    %c0_i32 = arith.constant 0 : i32
    %c0_i32_0 = arith.constant 0 : i32
    %c0_i32_1 = arith.constant 0 : i32
    return %arg1, %c0_i32, %c0_i32_0 : i32, i32, i32
  }
  func.func @transform_19(%arg0: i32, %arg1: i32) -> (i32, i32) {
    %c0_i32 = arith.constant 0 : i32
    %c0_i32_0 = arith.constant 0 : i32
    %c0_i32_1 = arith.constant 0 : i32
    return %c0_i32, %c0_i32_0 : i32, i32
  }
  func.func @transform_20(%arg0: i32, %arg1: i32) -> (i32, i32) {
    %c0_i32 = arith.constant 0 : i32
    %c0_i32_0 = arith.constant 0 : i32
    %c0_i32_1 = arith.constant 0 : i32
    return %c0_i32, %c0_i32_0 : i32, i32
  }
  func.func @transform_21(%arg0: i32, %arg1: i32) -> (i32, i32) {
    %c0_i32 = arith.constant 0 : i32
    %c0_i32_0 = arith.constant 0 : i32
    %c0_i32_1 = arith.constant 0 : i32
    return %c0_i32, %c0_i32_0 : i32, i32
  }
  func.func @transform_22(%arg0: i32, %arg1: i32) -> (i32, i32) {
    %c0_i32 = arith.constant 0 : i32
    %c0_i32_0 = arith.constant 0 : i32
    %c0_i32_1 = arith.constant 0 : i32
    return %c0_i32, %c0_i32_0 : i32, i32
  }
  func.func @transform_23(%arg0: i32, %arg1: i32) -> (i32, i32, i32) {
    %c0_i32 = arith.constant 0 : i32
    %c0_i32_0 = arith.constant 0 : i32
    %c0_i32_1 = arith.constant 0 : i32
    return %arg0, %c0_i32, %c0_i32_0 : i32, i32, i32
  }
}

</mosaic_0001>

<llo_original>
// kernel: vit_forward.1
$region0: #{vit_forward.1}
  #allocation0 [shape = 'u32[]', space=smem, size = 0x4, offset = 0x4, fixed_abs, tag = 'smem constant byte address 0x4 - core index']
  #allocation1 [shape = 'u32[144,128]{1,0:T(1,128)}', space=vmem, size = 0x12000, scoped, tag = 'internal scratch']
  #allocation2 [shape = 'f32[8,128]{1,0:T(8,128)}', space=vmem, size = 0x1000, scoped, tag = 'scratch operand']
  %s0 = inlined_call_operand.vmem [shape: f32[2,4,768], index: 0, kind: input, shape index: {}]
  %s1 = inlined_call_operand.vmem [shape: bf16[768,128], index: 1, kind: input, shape index: {}]
  %s2 = inlined_call_operand.vmem [shape: f32[1,128], index: 2, kind: input, shape index: {}]
  %s3 = inlined_call_operand.vmem [shape: f32[1,128], index: 3, kind: input, shape index: {}]
  %s4 = inlined_call_operand.vmem [shape: f32[5,128], index: 4, kind: input, shape index: {}]
  %s5 = inlined_call_operand.vmem [shape: f32[32,32], index: 5, kind: input, shape index: {}]
  %s6 = inlined_call_operand.vmem [shape: f32[32,128], index: 6, kind: input, shape index: {}]
  %s7 = inlined_call_operand.vmem [shape: f32[2,1,128], index: 7, kind: input, shape index: {}]
  %s8 = inlined_call_operand.vmem [shape: f32[2,1,128], index: 8, kind: input, shape index: {}]
  %s9 = inlined_call_operand.vmem [shape: bf16[2,128,384], index: 9, kind: input, shape index: {}]
  %s10 = inlined_call_operand.vmem [shape: f32[2,1,384], index: 10, kind: input, shape index: {}]
  %s11 = inlined_call_operand.vmem [shape: bf16[2,128,128], index: 11, kind: input, shape index: {}]
  %s12 = inlined_call_operand.vmem [shape: f32[2,1,128], index: 12, kind: input, shape index: {}]
  %s13 = inlined_call_operand.vmem [shape: f32[2,1,128], index: 13, kind: input, shape index: {}]
  %s14 = inlined_call_operand.vmem [shape: f32[2,1,128], index: 14, kind: input, shape index: {}]
  %s15 = inlined_call_operand.vmem [shape: bf16[2,128,256], index: 15, kind: input, shape index: {}]
  %s16 = inlined_call_operand.vmem [shape: f32[2,1,256], index: 16, kind: input, shape index: {}]
  %s17 = inlined_call_operand.vmem [shape: bf16[2,256,128], index: 17, kind: input, shape index: {}]
  %s18 = inlined_call_operand.vmem [shape: f32[2,1,128], index: 18, kind: input, shape index: {}]
  %s19 = inlined_call_operand.vmem [shape: f32[1,128], index: 19, kind: input, shape index: {}]
  %s20 = inlined_call_operand.vmem [shape: f32[1,128], index: 20, kind: input, shape index: {}]
  %s21 = inlined_call_operand.vmem [shape: bf16[128,128], index: 21, kind: input, shape index: {}]
  %s22 = inlined_call_operand.vmem [shape: f32[1,128], index: 22, kind: input, shape index: {}]
  %s23 = inlined_call_operand.hbm [shape: f32[2,1,128], index: 23, kind: output, shape index: {}]
  %s24 = sld [smem:[#allocation0]]
  $region133: #{vit_forward.1} parent=0
    _
  %s26 = ssub.s32 1, %s24
  %s27 = scalar_select 0, %s26, %s24
  $region1: #{vit_forward.1} parent=0
    #allocation3 [shape = 'u8[1024]{0}', space=vmem, size = 0x400, scoped, tag = 'output window, operand 0']
    #allocation4 [shape = 's32[2]{0}', space=sflag, size = 0x8, scoped, tag = 'scoped memory for vit_forward.1']
    %28 = vsyncpa [#allocation4], 0
    %s29 = scalar_lea.sflag [#allocation4], 1
    %30 = vsyncpa %s29, 0
    loop: start=0, step=1, limit=6
    $region2: #{vit_forward.1} parent=1 // loop_pre_header
      _
    $region3: #{vit_forward.1} parent=1 // loop_header
      %s32 = sphi 0, %s36
      %p33 = scmp.ge.s32.totalorder %s32, 6
      %s39 = sphi 0, %s51
      %s40 = sphi 0, %s47
      %s41 = sphi 0, %s39
      %s42 = sphi 0, %s40
      %s43 = sphi 0, %s41
      %s44 = sphi 0, %s42
      %s54 = sphi 0, %s56
      %s57 = sphi 0, %s54
      %s58 = sphi 0, %s57
      %s74 = sphi 0, %s58
      %s78 = sphi 0, %s78
      %s80 = sphi 0, %s78
      %s81 = sphi 0, %s80
      %s95 = sphi 0, %s81
      %s99 = sphi 0, %s99
      %s101 = sphi 0, %s99
      %s102 = sphi 0, %s101
      %s116 = sphi 0, %s102
      %s120 = sphi 0, %s120
      %s122 = sphi 0, %s120
      %s123 = sphi 0, %s122
      %s137 = sphi 0, %s123
      %s141 = sphi 0, %s141
      %s143 = sphi 0, %s141
      %s144 = sphi 0, %s143
      %s158 = sphi 0, %s144
      %s162 = sphi 0, %s162
      %s164 = sphi 0, %s162
      %s165 = sphi 0, %s164
      %s179 = sphi 0, %s165
      %s183 = sphi 0, %s183
      %s185 = sphi 0, %s183
      %s186 = sphi 0, %s185
      %s200 = sphi 0, %s186
      %s206 = sphi 0, %s208
      %s209 = sphi 0, %s206
      %s210 = sphi 0, %s209
      %s226 = sphi 0, %s210
      %s232 = sphi 0, %s234
      %s235 = sphi 0, %s232
      %s236 = sphi 0, %s235
      %s252 = sphi 0, %s236
      %s258 = sphi 0, %s260
      %s261 = sphi 0, %s258
      %s262 = sphi 0, %s261
      %s278 = sphi 0, %s262
      %s284 = sphi 0, %s286
      %s287 = sphi 0, %s284
      %s288 = sphi 0, %s287
      %s304 = sphi 0, %s288
      %s310 = sphi 0, %s312
      %s313 = sphi 0, %s310
      %s314 = sphi 0, %s313
      %s330 = sphi 0, %s314
      %s336 = sphi 0, %s338
      %s339 = sphi 0, %s336
      %s340 = sphi 0, %s339
      %s356 = sphi 0, %s340
      %s362 = sphi 0, %s364
      %s365 = sphi 0, %s362
      %s366 = sphi 0, %s365
      %s382 = sphi 0, %s366
      %s388 = sphi 0, %s390
      %s391 = sphi 0, %s388
      %s392 = sphi 0, %s391
      %s408 = sphi 0, %s392
      %s414 = sphi 0, %s416
      %s417 = sphi 0, %s414
      %s418 = sphi 0, %s417
      %s434 = sphi 0, %s418
      %s440 = sphi 0, %s442
      %s443 = sphi 0, %s440
      %s444 = sphi 0, %s443
      %s460 = sphi 0, %s444
      %s466 = sphi 0, %s468
      %s469 = sphi 0, %s466
      %s470 = sphi 0, %s469
      %s486 = sphi 0, %s470
      %s492 = sphi 0, %s494
      %s495 = sphi 0, %s492
      %s496 = sphi 0, %s495
      %s512 = sphi 0, %s496
      %s516 = sphi 0, %s516
      %s518 = sphi 0, %s516
      %s519 = sphi 0, %s518
      %s533 = sphi 0, %s519
      %s537 = sphi 0, %s537
      %s539 = sphi 0, %s537
      %s540 = sphi 0, %s539
      %s554 = sphi 0, %s540
      %s558 = sphi 0, %s558
      %s560 = sphi 0, %s558
      %s561 = sphi 0, %s560
      %s575 = sphi 0, %s561
      %s579 = sphi 0, %s579
      %s581 = sphi 0, %s579
      %s582 = sphi 0, %s581
      %s596 = sphi 0, %s582
      %s602 = sphi 0, %s604
      %s605 = sphi 0, %s602
      %s606 = sphi 0, %s605
      %s622 = sphi 0, %s606
    $region4: #{vit_forward.1} parent=1 // loop_header_branch
      %35 = sbr.rel (%p33) target = $region8
    $region5: #{vit_forward.1} parent=1 // loop_body
      %s37 = ssub.s32 %s32, 1
      %s38 = ssub.s32 %s32, 2
      %s45 = sadd.s32 1, %s40
      %p46 = scmp.ge.s32.totalorder %s45, 2
      %s47 = scalar_select %p46, 0, %s45
      %s48 = sadd.s32 1, %s39
      %s49 = scalar_select %p46, %s48, %s39
      %p50 = scmp.ge.s32.totalorder %s49, 2
      %s51 = scalar_select %p50, 0, %s49
      %s52 = ssub.s32 %s39, %s51
      %p53 = scmp.eq.s32.totalorder %s52, 0
      %s55 = sadd.s32 %s54, 1
      %s56 = scalar_select %p53, %s54, %s55
      %p59 = pneg %p53
      %p60 = scmp.eq.s32.totalorder %s32, 3
      %p61 = por %p59, %p60
      %p62 = scmp.ne.s32.totalorder %s54, %s57
      %p63 = scmp.eq.s32.totalorder %s32, 0
      %p64 = por %p62, %p63
      %p65 = scmp.ne.s32.totalorder %s54, %s57
      %p66 = scmp.eq.s32.totalorder %s37, 3
      %p67 = por %p65, %p66
      %p68 = scmp.ne.s32.totalorder %s57, %s58
      %p69 = scmp.eq.s32.totalorder %s37, 0
      %p70 = por %p68, %p69
      %p71 = scmp.ne.s32.totalorder %s57, %s58
      %p72 = scmp.eq.s32.totalorder %s38, 3
      %p73 = por %p71, %p72
      %p75 = scmp.ne.s32.totalorder %s58, %s74
      %p76 = scmp.eq.s32.totalorder %s38, 0
      %p77 = por %p75, %p76
      %s79 = sadd.s32 %s78, 1
      %p82 = scmp.eq.s32.totalorder %s32, 3
      %p83 = scmp.ne.s32.totalorder %s78, %s80
      %p84 = scmp.eq.s32.totalorder %s32, 0
      %p85 = por %p83, %p84
      %p86 = scmp.ne.s32.totalorder %s78, %s80
      %p87 = scmp.eq.s32.totalorder %s37, 3
      %p88 = por %p86, %p87
      %p89 = scmp.ne.s32.totalorder %s80, %s81
      %p90 = scmp.eq.s32.totalorder %s37, 0
      %p91 = por %p89, %p90
      %p92 = scmp.ne.s32.totalorder %s80, %s81
      %p93 = scmp.eq.s32.totalorder %s38, 3
      %p94 = por %p92, %p93
      %p96 = scmp.ne.s32.totalorder %s81, %s95
      %p97 = scmp.eq.s32.totalorder %s38, 0
      %p98 = por %p96, %p97
      %s100 = sadd.s32 %s99, 1
      %p103 = scmp.eq.s32.totalorder %s32, 3
      %p104 = scmp.ne.s32.totalorder %s99, %s101
      %p105 = scmp.eq.s32.totalorder %s32, 0
      %p106 = por %p104, %p105
      %p107 = scmp.ne.s32.totalorder %s99, %s101
      %p108 = scmp.eq.s32.totalorder %s37, 3
      %p109 = por %p107, %p108
      %p110 = scmp.ne.s32.totalorder %s101, %s102
      %p111 = scmp.eq.s32.totalorder %s37, 0
      %p112 = por %p110, %p111
      %p113 = scmp.ne.s32.totalorder %s101, %s102
      %p114 = scmp.eq.s32.totalorder %s38, 3
      %p115 = por %p113, %p114
      %p117 = scmp.ne.s32.totalorder %s102, %s116
      %p118 = scmp.eq.s32.totalorder %s38, 0
      %p119 = por %p117, %p118
      %s121 = sadd.s32 %s120, 1
      %p124 = scmp.eq.s32.totalorder %s32, 3
      %p125 = scmp.ne.s32.totalorder %s120, %s122
      %p126 = scmp.eq.s32.totalorder %s32, 0
      %p127 = por %p125, %p126
      %p128 = scmp.ne.s32.totalorder %s120, %s122
      %p129 = scmp.eq.s32.totalorder %s37, 3
      %p130 = por %p128, %p129
      %p131 = scmp.ne.s32.totalorder %s122, %s123
      %p132 = scmp.eq.s32.totalorder %s37, 0
      %p133 = por %p131, %p132
      %p134 = scmp.ne.s32.totalorder %s122, %s123
      %p135 = scmp.eq.s32.totalorder %s38, 3
      %p136 = por %p134, %p135
      %p138 = scmp.ne.s32.totalorder %s123, %s137
      %p139 = scmp.eq.s32.totalorder %s38, 0
      %p140 = por %p138, %p139
      %s142 = sadd.s32 %s141, 1
      %p145 = scmp.eq.s32.totalorder %s32, 3
      %p146 = scmp.ne.s32.totalorder %s141, %s143
      %p147 = scmp.eq.s32.totalorder %s32, 0
      %p148 = por %p146, %p147
      %p149 = scmp.ne.s32.totalorder %s141, %s143
      %p150 = scmp.eq.s32.totalorder %s37, 3
      %p151 = por %p149, %p150
      %p152 = scmp.ne.s32.totalorder %s143, %s144
      %p153 = scmp.eq.s32.totalorder %s37, 0
      %p154 = por %p152, %p153
      %p155 = scmp.ne.s32.totalorder %s143, %s144
      %p156 = scmp.eq.s32.totalorder %s38, 3
      %p157 = por %p155, %p156
      %p159 = scmp.ne.s32.totalorder %s144, %s158
      %p160 = scmp.eq.s32.totalorder %s38, 0
      %p161 = por %p159, %p160
      %s163 = sadd.s32 %s162, 1
      %p166 = scmp.eq.s32.totalorder %s32, 3
      %p167 = scmp.ne.s32.totalorder %s162, %s164
      %p168 = scmp.eq.s32.totalorder %s32, 0
      %p169 = por %p167, %p168
      %p170 = scmp.ne.s32.totalorder %s162, %s164
      %p171 = scmp.eq.s32.totalorder %s37, 3
      %p172 = por %p170, %p171
      %p173 = scmp.ne.s32.totalorder %s164, %s165
      %p174 = scmp.eq.s32.totalorder %s37, 0
      %p175 = por %p173, %p174
      %p176 = scmp.ne.s32.totalorder %s164, %s165
      %p177 = scmp.eq.s32.totalorder %s38, 3
      %p178 = por %p176, %p177
      %p180 = scmp.ne.s32.totalorder %s165, %s179
      %p181 = scmp.eq.s32.totalorder %s38, 0
      %p182 = por %p180, %p181
      %s184 = sadd.s32 %s183, 1
      %p187 = scmp.eq.s32.totalorder %s32, 3
      %p188 = scmp.ne.s32.totalorder %s183, %s185
      %p189 = scmp.eq.s32.totalorder %s32, 0
      %p190 = por %p188, %p189
      %p191 = scmp.ne.s32.totalorder %s183, %s185
      %p192 = scmp.eq.s32.totalorder %s37, 3
      %p193 = por %p191, %p192
      %p194 = scmp.ne.s32.totalorder %s185, %s186
      %p195 = scmp.eq.s32.totalorder %s37, 0
      %p196 = por %p194, %p195
      %p197 = scmp.ne.s32.totalorder %s185, %s186
      %p198 = scmp.eq.s32.totalorder %s38, 3
      %p199 = por %p197, %p198
      %p201 = scmp.ne.s32.totalorder %s186, %s200
      %p202 = scmp.eq.s32.totalorder %s38, 0
      %p203 = por %p201, %p202
      %s204 = ssub.s32 %s40, %s47
      %p205 = scmp.eq.s32.totalorder %s204, 0
      %s207 = sadd.s32 %s206, 1
      %s208 = scalar_select %p205, %s206, %s207
      %p211 = pneg %p205
      %p212 = scmp.eq.s32.totalorder %s32, 3
      %p213 = por %p211, %p212
      %p214 = scmp.ne.s32.totalorder %s206, %s209
      %p215 = scmp.eq.s32.totalorder %s32, 0
      %p216 = por %p214, %p215
      %p217 = scmp.ne.s32.totalorder %s206, %s209
      %p218 = scmp.eq.s32.totalorder %s37, 3
      %p219 = por %p217, %p218
      %p220 = scmp.ne.s32.totalorder %s209, %s210
      %p221 = scmp.eq.s32.totalorder %s37, 0
      %p222 = por %p220, %p221
      %p223 = scmp.ne.s32.totalorder %s209, %s210
      %p224 = scmp.eq.s32.totalorder %s38, 3
      %p225 = por %p223, %p224
      %p227 = scmp.ne.s32.totalorder %s210, %s226
      %p228 = scmp.eq.s32.totalorder %s38, 0
      %p229 = por %p227, %p228
      %s230 = ssub.s32 %s40, %s47
      %p231 = scmp.eq.s32.totalorder %s230, 0
      %s233 = sadd.s32 %s232, 1
      %s234 = scalar_select %p231, %s232, %s233
      %p237 = pneg %p231
      %p238 = scmp.eq.s32.totalorder %s32, 3
      %p239 = por %p237, %p238
      %p240 = scmp.ne.s32.totalorder %s232, %s235
      %p241 = scmp.eq.s32.totalorder %s32, 0
      %p242 = por %p240, %p241
      %p243 = scmp.ne.s32.totalorder %s232, %s235
      %p244 = scmp.eq.s32.totalorder %s37, 3
      %p245 = por %p243, %p244
      %p246 = scmp.ne.s32.totalorder %s235, %s236
      %p247 = scmp.eq.s32.totalorder %s37, 0
      %p248 = por %p246, %p247
      %p249 = scmp.ne.s32.totalorder %s235, %s236
      %p250 = scmp.eq.s32.totalorder %s38, 3
      %p251 = por %p249, %p250
      %p253 = scmp.ne.s32.totalorder %s236, %s252
      %p254 = scmp.eq.s32.totalorder %s38, 0
      %p255 = por %p253, %p254
      %s256 = ssub.s32 %s40, %s47
      %p257 = scmp.eq.s32.totalorder %s256, 0
      %s259 = sadd.s32 %s258, 1
      %s260 = scalar_select %p257, %s258, %s259
      %p263 = pneg %p257
      %p264 = scmp.eq.s32.totalorder %s32, 3
      %p265 = por %p263, %p264
      %p266 = scmp.ne.s32.totalorder %s258, %s261
      %p267 = scmp.eq.s32.totalorder %s32, 0
      %p268 = por %p266, %p267
      %p269 = scmp.ne.s32.totalorder %s258, %s261
      %p270 = scmp.eq.s32.totalorder %s37, 3
      %p271 = por %p269, %p270
      %p272 = scmp.ne.s32.totalorder %s261, %s262
      %p273 = scmp.eq.s32.totalorder %s37, 0
      %p274 = por %p272, %p273
      %p275 = scmp.ne.s32.totalorder %s261, %s262
      %p276 = scmp.eq.s32.totalorder %s38, 3
      %p277 = por %p275, %p276
      %p279 = scmp.ne.s32.totalorder %s262, %s278
      %p280 = scmp.eq.s32.totalorder %s38, 0
      %p281 = por %p279, %p280
      %s282 = ssub.s32 %s40, %s47
      %p283 = scmp.eq.s32.totalorder %s282, 0
      %s285 = sadd.s32 %s284, 1
      %s286 = scalar_select %p283, %s284, %s285
      %p289 = pneg %p283
      %p290 = scmp.eq.s32.totalorder %s32, 3
      %p291 = por %p289, %p290
      %p292 = scmp.ne.s32.totalorder %s284, %s287
      %p293 = scmp.eq.s32.totalorder %s32, 0
      %p294 = por %p292, %p293
      %p295 = scmp.ne.s32.totalorder %s284, %s287
      %p296 = scmp.eq.s32.totalorder %s37, 3
      %p297 = por %p295, %p296
      %p298 = scmp.ne.s32.totalorder %s287, %s288
      %p299 = scmp.eq.s32.totalorder %s37, 0
      %p300 = por %p298, %p299
      %p301 = scmp.ne.s32.totalorder %s287, %s288
      %p302 = scmp.eq.s32.totalorder %s38, 3
      %p303 = por %p301, %p302
      %p305 = scmp.ne.s32.totalorder %s288, %s304
      %p306 = scmp.eq.s32.totalorder %s38, 0
      %p307 = por %p305, %p306
      %s308 = ssub.s32 %s40, %s47
      %p309 = scmp.eq.s32.totalorder %s308, 0
      %s311 = sadd.s32 %s310, 1
      %s312 = scalar_select %p309, %s310, %s311
      %p315 = pneg %p309
      %p316 = scmp.eq.s32.totalorder %s32, 3
      %p317 = por %p315, %p316
      %p318 = scmp.ne.s32.totalorder %s310, %s313
      %p319 = scmp.eq.s32.totalorder %s32, 0
      %p320 = por %p318, %p319
      %p321 = scmp.ne.s32.totalorder %s310, %s313
      %p322 = scmp.eq.s32.totalorder %s37, 3
      %p323 = por %p321, %p322
      %p324 = scmp.ne.s32.totalorder %s313, %s314
      %p325 = scmp.eq.s32.totalorder %s37, 0
      %p326 = por %p324, %p325
      %p327 = scmp.ne.s32.totalorder %s313, %s314
      %p328 = scmp.eq.s32.totalorder %s38, 3
      %p329 = por %p327, %p328
      %p331 = scmp.ne.s32.totalorder %s314, %s330
      %p332 = scmp.eq.s32.totalorder %s38, 0
      %p333 = por %p331, %p332
      %s334 = ssub.s32 %s40, %s47
      %p335 = scmp.eq.s32.totalorder %s334, 0
      %s337 = sadd.s32 %s336, 1
      %s338 = scalar_select %p335, %s336, %s337
      %p341 = pneg %p335
      %p342 = scmp.eq.s32.totalorder %s32, 3
      %p343 = por %p341, %p342
      %p344 = scmp.ne.s32.totalorder %s336, %s339
      %p345 = scmp.eq.s32.totalorder %s32, 0
      %p346 = por %p344, %p345
      %p347 = scmp.ne.s32.totalorder %s336, %s339
      %p348 = scmp.eq.s32.totalorder %s37, 3
      %p349 = por %p347, %p348
      %p350 = scmp.ne.s32.totalorder %s339, %s340
      %p351 = scmp.eq.s32.totalorder %s37, 0
      %p352 = por %p350, %p351
      %p353 = scmp.ne.s32.totalorder %s339, %s340
      %p354 = scmp.eq.s32.totalorder %s38, 3
      %p355 = por %p353, %p354
      %p357 = scmp.ne.s32.totalorder %s340, %s356
      %p358 = scmp.eq.s32.totalorder %s38, 0
      %p359 = por %p357, %p358
      %s360 = ssub.s32 %s40, %s47
      %p361 = scmp.eq.s32.totalorder %s360, 0
      %s363 = sadd.s32 %s362, 1
      %s364 = scalar_select %p361, %s362, %s363
      %p367 = pneg %p361
      %p368 = scmp.eq.s32.totalorder %s32, 3
      %p369 = por %p367, %p368
      %p370 = scmp.ne.s32.totalorder %s362, %s365
      %p371 = scmp.eq.s32.totalorder %s32, 0
      %p372 = por %p370, %p371
      %p373 = scmp.ne.s32.totalorder %s362, %s365
      %p374 = scmp.eq.s32.totalorder %s37, 3
      %p375 = por %p373, %p374
      %p376 = scmp.ne.s32.totalorder %s365, %s366
      %p377 = scmp.eq.s32.totalorder %s37, 0
      %p378 = por %p376, %p377
      %p379 = scmp.ne.s32.totalorder %s365, %s366
      %p380 = scmp.eq.s32.totalorder %s38, 3
      %p381 = por %p379, %p380
      %p383 = scmp.ne.s32.totalorder %s366, %s382
      %p384 = scmp.eq.s32.totalorder %s38, 0
      %p385 = por %p383, %p384
      %s386 = ssub.s32 %s40, %s47
      %p387 = scmp.eq.s32.totalorder %s386, 0
      %s389 = sadd.s32 %s388, 1
      %s390 = scalar_select %p387, %s388, %s389
      %p393 = pneg %p387
      %p394 = scmp.eq.s32.totalorder %s32, 3
      %p395 = por %p393, %p394
      %p396 = scmp.ne.s32.totalorder %s388, %s391
      %p397 = scmp.eq.s32.totalorder %s32, 0
      %p398 = por %p396, %p397
      %p399 = scmp.ne.s32.totalorder %s388, %s391
      %p400 = scmp.eq.s32.totalorder %s37, 3
      %p401 = por %p399, %p400
      %p402 = scmp.ne.s32.totalorder %s391, %s392
      %p403 = scmp.eq.s32.totalorder %s37, 0
      %p404 = por %p402, %p403
      %p405 = scmp.ne.s32.totalorder %s391, %s392
      %p406 = scmp.eq.s32.totalorder %s38, 3
      %p407 = por %p405, %p406
      %p409 = scmp.ne.s32.totalorder %s392, %s408
      %p410 = scmp.eq.s32.totalorder %s38, 0
      %p411 = por %p409, %p410
      %s412 = ssub.s32 %s40, %s47
      %p413 = scmp.eq.s32.totalorder %s412, 0
      %s415 = sadd.s32 %s414, 1
      %s416 = scalar_select %p413, %s414, %s415
      %p419 = pneg %p413
      %p420 = scmp.eq.s32.totalorder %s32, 3
      %p421 = por %p419, %p420
      %p422 = scmp.ne.s32.totalorder %s414, %s417
      %p423 = scmp.eq.s32.totalorder %s32, 0
      %p424 = por %p422, %p423
      %p425 = scmp.ne.s32.totalorder %s414, %s417
      %p426 = scmp.eq.s32.totalorder %s37, 3
      %p427 = por %p425, %p426
      %p428 = scmp.ne.s32.totalorder %s417, %s418
      %p429 = scmp.eq.s32.totalorder %s37, 0
      %p430 = por %p428, %p429
      %p431 = scmp.ne.s32.totalorder %s417, %s418
      %p432 = scmp.eq.s32.totalorder %s38, 3
      %p433 = por %p431, %p432
      %p435 = scmp.ne.s32.totalorder %s418, %s434
      %p436 = scmp.eq.s32.totalorder %s38, 0
      %p437 = por %p435, %p436
      %s438 = ssub.s32 %s40, %s47
      %p439 = scmp.eq.s32.totalorder %s438, 0
      %s441 = sadd.s32 %s440, 1
      %s442 = scalar_select %p439, %s440, %s441
      %p445 = pneg %p439
      %p446 = scmp.eq.s32.totalorder %s32, 3
      %p447 = por %p445, %p446
      %p448 = scmp.ne.s32.totalorder %s440, %s443
      %p449 = scmp.eq.s32.totalorder %s32, 0
      %p450 = por %p448, %p449
      %p451 = scmp.ne.s32.totalorder %s440, %s443
      %p452 = scmp.eq.s32.totalorder %s37, 3
      %p453 = por %p451, %p452
      %p454 = scmp.ne.s32.totalorder %s443, %s444
      %p455 = scmp.eq.s32.totalorder %s37, 0
      %p456 = por %p454, %p455
      %p457 = scmp.ne.s32.totalorder %s443, %s444
      %p458 = scmp.eq.s32.totalorder %s38, 3
      %p459 = por %p457, %p458
      %p461 = scmp.ne.s32.totalorder %s444, %s460
      %p462 = scmp.eq.s32.totalorder %s38, 0
      %p463 = por %p461, %p462
      %s464 = ssub.s32 %s40, %s47
      %p465 = scmp.eq.s32.totalorder %s464, 0
      %s467 = sadd.s32 %s466, 1
      %s468 = scalar_select %p465, %s466, %s467
      %p471 = pneg %p465
      %p472 = scmp.eq.s32.totalorder %s32, 3
      %p473 = por %p471, %p472
      %p474 = scmp.ne.s32.totalorder %s466, %s469
      %p475 = scmp.eq.s32.totalorder %s32, 0
      %p476 = por %p474, %p475
      %p477 = scmp.ne.s32.totalorder %s466, %s469
      %p478 = scmp.eq.s32.totalorder %s37, 3
      %p479 = por %p477, %p478
      %p480 = scmp.ne.s32.totalorder %s469, %s470
      %p481 = scmp.eq.s32.totalorder %s37, 0
      %p482 = por %p480, %p481
      %p483 = scmp.ne.s32.totalorder %s469, %s470
      %p484 = scmp.eq.s32.totalorder %s38, 3
      %p485 = por %p483, %p484
      %p487 = scmp.ne.s32.totalorder %s470, %s486
      %p488 = scmp.eq.s32.totalorder %s38, 0
      %p489 = por %p487, %p488
      %s490 = ssub.s32 %s40, %s47
      %p491 = scmp.eq.s32.totalorder %s490, 0
      %s493 = sadd.s32 %s492, 1
      %s494 = scalar_select %p491, %s492, %s493
      %p497 = pneg %p491
      %p498 = scmp.eq.s32.totalorder %s32, 3
      %p499 = por %p497, %p498
      %p500 = scmp.ne.s32.totalorder %s492, %s495
      %p501 = scmp.eq.s32.totalorder %s32, 0
      %p502 = por %p500, %p501
      %p503 = scmp.ne.s32.totalorder %s492, %s495
      %p504 = scmp.eq.s32.totalorder %s37, 3
      %p505 = por %p503, %p504
      %p506 = scmp.ne.s32.totalorder %s495, %s496
      %p507 = scmp.eq.s32.totalorder %s37, 0
      %p508 = por %p506, %p507
      %p509 = scmp.ne.s32.totalorder %s495, %s496
      %p510 = scmp.eq.s32.totalorder %s38, 3
      %p511 = por %p509, %p510
      %p513 = scmp.ne.s32.totalorder %s496, %s512
      %p514 = scmp.eq.s32.totalorder %s38, 0
      %p515 = por %p513, %p514
      %s517 = sadd.s32 %s516, 1
      %p520 = scmp.eq.s32.totalorder %s32, 3
      %p521 = scmp.ne.s32.totalorder %s516, %s518
      %p522 = scmp.eq.s32.totalorder %s32, 0
      %p523 = por %p521, %p522
      %p524 = scmp.ne.s32.totalorder %s516, %s518
      %p525 = scmp.eq.s32.totalorder %s37, 3
      %p526 = por %p524, %p525
      %p527 = scmp.ne.s32.totalorder %s518, %s519
      %p528 = scmp.eq.s32.totalorder %s37, 0
      %p529 = por %p527, %p528
      %p530 = scmp.ne.s32.totalorder %s518, %s519
      %p531 = scmp.eq.s32.totalorder %s38, 3
      %p532 = por %p530, %p531
      %p534 = scmp.ne.s32.totalorder %s519, %s533
      %p535 = scmp.eq.s32.totalorder %s38, 0
      %p536 = por %p534, %p535
      %s538 = sadd.s32 %s537, 1
      %p541 = scmp.eq.s32.totalorder %s32, 3
      %p542 = scmp.ne.s32.totalorder %s537, %s539
      %p543 = scmp.eq.s32.totalorder %s32, 0
      %p544 = por %p542, %p543
      %p545 = scmp.ne.s32.totalorder %s537, %s539
      %p546 = scmp.eq.s32.totalorder %s37, 3
      %p547 = por %p545, %p546
      %p548 = scmp.ne.s32.totalorder %s539, %s540
      %p549 = scmp.eq.s32.totalorder %s37, 0
      %p550 = por %p548, %p549
      %p551 = scmp.ne.s32.totalorder %s539, %s540
      %p552 = scmp.eq.s32.totalorder %s38, 3
      %p553 = por %p551, %p552
      %p555 = scmp.ne.s32.totalorder %s540, %s554
      %p556 = scmp.eq.s32.totalorder %s38, 0
      %p557 = por %p555, %p556
      %s559 = sadd.s32 %s558, 1
      %p562 = scmp.eq.s32.totalorder %s32, 3
      %p563 = scmp.ne.s32.totalorder %s558, %s560
      %p564 = scmp.eq.s32.totalorder %s32, 0
      %p565 = por %p563, %p564
      %p566 = scmp.ne.s32.totalorder %s558, %s560
      %p567 = scmp.eq.s32.totalorder %s37, 3
      %p568 = por %p566, %p567
      %p569 = scmp.ne.s32.totalorder %s560, %s561
      %p570 = scmp.eq.s32.totalorder %s37, 0
      %p571 = por %p569, %p570
      %p572 = scmp.ne.s32.totalorder %s560, %s561
      %p573 = scmp.eq.s32.totalorder %s38, 3
      %p574 = por %p572, %p573
      %p576 = scmp.ne.s32.totalorder %s561, %s575
      %p577 = scmp.eq.s32.totalorder %s38, 0
      %p578 = por %p576, %p577
      %s580 = sadd.s32 %s579, 1
      %p583 = scmp.eq.s32.totalorder %s32, 3
      %p584 = scmp.ne.s32.totalorder %s579, %s581
      %p585 = scmp.eq.s32.totalorder %s32, 0
      %p586 = por %p584, %p585
      %p587 = scmp.ne.s32.totalorder %s579, %s581
      %p588 = scmp.eq.s32.totalorder %s37, 3
      %p589 = por %p587, %p588
      %p590 = scmp.ne.s32.totalorder %s581, %s582
      %p591 = scmp.eq.s32.totalorder %s37, 0
      %p592 = por %p590, %p591
      %p593 = scmp.ne.s32.totalorder %s581, %s582
      %p594 = scmp.eq.s32.totalorder %s38, 3
      %p595 = por %p593, %p594
      %p597 = scmp.ne.s32.totalorder %s582, %s596
      %p598 = scmp.eq.s32.totalorder %s38, 0
      %p599 = por %p597, %p598
      %s600 = ssub.s32 %s39, %s51
      %p601 = scmp.eq.s32.totalorder %s600, 0
      %s603 = sadd.s32 %s602, 1
      %s604 = scalar_select %p601, %s602, %s603
      %p607 = pneg %p601
      %p608 = scmp.eq.s32.totalorder %s32, 3
      %p609 = por %p607, %p608
      %p610 = scmp.ne.s32.totalorder %s602, %s605
      %p611 = scmp.eq.s32.totalorder %s32, 0
      %p612 = por %p610, %p611
      %p613 = scmp.ne.s32.totalorder %s602, %s605
      %p614 = scmp.eq.s32.totalorder %s37, 3
      %p615 = por %p613, %p614
      %p616 = scmp.ne.s32.totalorder %s605, %s606
      %p617 = scmp.eq.s32.totalorder %s37, 0
      %p618 = por %p616, %p617
      %p619 = scmp.ne.s32.totalorder %s605, %s606
      %p620 = scmp.eq.s32.totalorder %s38, 3
      %p621 = por %p619, %p620
      %p623 = scmp.ne.s32.totalorder %s606, %s622
      %p624 = scmp.eq.s32.totalorder %s38, 0
      %p625 = por %p623, %p624
      %p626 = scmp.le.s32.totalorder 1, %s32
      %p627 = scmp.lt.s32.totalorder %s32, 5
      %p628 = pnand %p626, %p627
      %p629 = pneg %p628
      // Predicated region
      $region9: #{vit_forward.1} parent=5 // pred_check
        _
      $region10: #{vit_forward.1} parent=5 // pred_check_branch
        %631 = sbr.rel (%p628) target = $region12
      $region11: #{vit_forward.1} parent=5 // pred_region
        %s632 = ssub.s32 %s32, 1
        // Predicated region
        $region13: #{vit_forward.1} parent=11 // pred_check
          %p633 = pneg %p91
        $region14: #{vit_forward.1} parent=11 // pred_check_branch
          %635 = sbr.rel (%p633) target = $region16
        $region15: #{vit_forward.1} parent=11 // pred_region
          _
        $region16: #{vit_forward.1} parent=11 // pred_fallthru
          _
        // Predicated region
        $region17: #{vit_forward.1} parent=11 // pred_check
          %p636 = pneg %p112
        $region18: #{vit_forward.1} parent=11 // pred_check_branch
          %638 = sbr.rel (%p636) target = $region20
        $region19: #{vit_forward.1} parent=11 // pred_region
          _
        $region20: #{vit_forward.1} parent=11 // pred_fallthru
          _
        // Predicated region
        $region21: #{vit_forward.1} parent=11 // pred_check
          %p639 = pneg %p133
        $region22: #{vit_forward.1} parent=11 // pred_check_branch
          %641 = sbr.rel (%p639) target = $region24
        $region23: #{vit_forward.1} parent=11 // pred_region
          _
        $region24: #{vit_forward.1} parent=11 // pred_fallthru
          _
        // Predicated region
        $region25: #{vit_forward.1} parent=11 // pred_check
          %p642 = pneg %p154
        $region26: #{vit_forward.1} parent=11 // pred_check_branch
          %644 = sbr.rel (%p642) target = $region28
        $region27: #{vit_forward.1} parent=11 // pred_region
          _
        $region28: #{vit_forward.1} parent=11 // pred_fallthru
          _
        // Predicated region
        $region29: #{vit_forward.1} parent=11 // pred_check
          %p645 = pneg %p175
        $region30: #{vit_forward.1} parent=11 // pred_check_branch
          %647 = sbr.rel (%p645) target = $region32
        $region31: #{vit_forward.1} parent=11 // pred_region
          _
        $region32: #{vit_forward.1} parent=11 // pred_fallthru
          _
        // Predicated region
        $region33: #{vit_forward.1} parent=11 // pred_check
          %p648 = pneg %p196
        $region34: #{vit_forward.1} parent=11 // pred_check_branch
          %650 = sbr.rel (%p648) target = $region36
        $region35: #{vit_forward.1} parent=11 // pred_region
          _
        $region36: #{vit_forward.1} parent=11 // pred_fallthru
          _
        // Predicated region
        $region37: #{vit_forward.1} parent=11 // pred_check
          %p651 = pneg %p529
        $region38: #{vit_forward.1} parent=11 // pred_check_branch
          %653 = sbr.rel (%p651) target = $region40
        $region39: #{vit_forward.1} parent=11 // pred_region
          _
        $region40: #{vit_forward.1} parent=11 // pred_fallthru
          _
        // Predicated region
        $region41: #{vit_forward.1} parent=11 // pred_check
          %p654 = pneg %p550
        $region42: #{vit_forward.1} parent=11 // pred_check_branch
          %656 = sbr.rel (%p654) target = $region44
        $region43: #{vit_forward.1} parent=11 // pred_region
          _
        $region44: #{vit_forward.1} parent=11 // pred_fallthru
          _
        // Predicated region
        $region45: #{vit_forward.1} parent=11 // pred_check
          %p657 = pneg %p571
        $region46: #{vit_forward.1} parent=11 // pred_check_branch
          %659 = sbr.rel (%p657) target = $region48
        $region47: #{vit_forward.1} parent=11 // pred_region
          _
        $region48: #{vit_forward.1} parent=11 // pred_fallthru
          _
        // Predicated region
        $region49: #{vit_forward.1} parent=11 // pred_check
          %p660 = pneg %p592
        $region50: #{vit_forward.1} parent=11 // pred_check_branch
          %662 = sbr.rel (%p660) target = $region52
        $region51: #{vit_forward.1} parent=11 // pred_region
          _
        $region52: #{vit_forward.1} parent=11 // pred_fallthru
          _
      $region12: #{vit_forward.1} parent=5 // pred_fallthru
        _
      %p663 = scmp.lt.s32.totalorder %s32, 4
      // Predicated region
      $region53: #{vit_forward.1} parent=5 // pred_check
        %p664 = pneg %p663
      $region54: #{vit_forward.1} parent=5 // pred_check_branch
        %666 = sbr.rel (%p664) target = $region56
      $region55: #{vit_forward.1} parent=5 // pred_region
        // Predicated region
        $region57: #{vit_forward.1} parent=55 // pred_check
          %p667 = pneg %p64
        $region58: #{vit_forward.1} parent=55 // pred_check_branch
          %669 = sbr.rel (%p667) target = $region60
        $region59: #{vit_forward.1} parent=55 // pred_region
          %p670 = scmp.lt.s32.totalorder %s39, 1
          %s671 = scalar_select %p670, %s39, 1
          %s672 = smul.addr %s671, 6
          %s673 = smul.addr %s672, 4
          %s674 = scalar_lea.vmem %s0, %s673
        $region60: #{vit_forward.1} parent=55 // pred_fallthru
          _
        // Predicated region
        $region61: #{vit_forward.1} parent=55 // pred_check
          %p675 = pneg %p216
        $region62: #{vit_forward.1} parent=55 // pred_check_branch
          %677 = sbr.rel (%p675) target = $region64
        $region63: #{vit_forward.1} parent=55 // pred_region
          %p678 = scmp.lt.s32.totalorder %s40, 1
          %s679 = scalar_select %p678, %s40, 1
          %s680 = scalar_lea.vmem %s7, %s679
        $region64: #{vit_forward.1} parent=55 // pred_fallthru
          _
        // Predicated region
        $region65: #{vit_forward.1} parent=55 // pred_check
          %p681 = pneg %p242
        $region66: #{vit_forward.1} parent=55 // pred_check_branch
          %683 = sbr.rel (%p681) target = $region68
        $region67: #{vit_forward.1} parent=55 // pred_region
          %p684 = scmp.lt.s32.totalorder %s40, 1
          %s685 = scalar_select %p684, %s40, 1
          %s686 = scalar_lea.vmem %s8, %s685
        $region68: #{vit_forward.1} parent=55 // pred_fallthru
          _
        // Predicated region
        $region69: #{vit_forward.1} parent=55 // pred_check
          %p687 = pneg %p268
        $region70: #{vit_forward.1} parent=55 // pred_check_branch
          %689 = sbr.rel (%p687) target = $region72
        $region71: #{vit_forward.1} parent=55 // pred_region
          %p690 = scmp.lt.s32.totalorder %s40, 1
          %s691 = scalar_select %p690, %s40, 1
          %s692 = smul.addr %s691, 48
          %s693 = smul.addr %s692, 4
          %s694 = scalar_lea.vmem %s9, %s693
        $region72: #{vit_forward.1} parent=55 // pred_fallthru
          _
        // Predicated region
        $region73: #{vit_forward.1} parent=55 // pred_check
          %p695 = pneg %p294
        $region74: #{vit_forward.1} parent=55 // pred_check_branch
          %697 = sbr.rel (%p695) target = $region76
        $region75: #{vit_forward.1} parent=55 // pred_region
          %p698 = scmp.lt.s32.totalorder %s40, 1
          %s699 = scalar_select %p698, %s40, 1
          %s700 = smul.addr %s699, 3
          %s701 = scalar_lea.vmem %s10, %s700
        $region76: #{vit_forward.1} parent=55 // pred_fallthru
          _
        // Predicated region
        $region77: #{vit_forward.1} parent=55 // pred_check
          %p702 = pneg %p320
        $region78: #{vit_forward.1} parent=55 // pred_check_branch
          %704 = sbr.rel (%p702) target = $region80
        $region79: #{vit_forward.1} parent=55 // pred_region
          %p705 = scmp.lt.s32.totalorder %s40, 1
          %s706 = scalar_select %p705, %s40, 1
          %s707 = smul.addr %s706, 16
          %s708 = smul.addr %s707, 4
          %s709 = scalar_lea.vmem %s11, %s708
        $region80: #{vit_forward.1} parent=55 // pred_fallthru
          _
        // Predicated region
        $region81: #{vit_forward.1} parent=55 // pred_check
          %p710 = pneg %p346
        $region82: #{vit_forward.1} parent=55 // pred_check_branch
          %712 = sbr.rel (%p710) target = $region84
        $region83: #{vit_forward.1} parent=55 // pred_region
          %p713 = scmp.lt.s32.totalorder %s40, 1
          %s714 = scalar_select %p713, %s40, 1
          %s715 = scalar_lea.vmem %s12, %s714
        $region84: #{vit_forward.1} parent=55 // pred_fallthru
          _
        // Predicated region
        $region85: #{vit_forward.1} parent=55 // pred_check
          %p716 = pneg %p372
        $region86: #{vit_forward.1} parent=55 // pred_check_branch
          %718 = sbr.rel (%p716) target = $region88
        $region87: #{vit_forward.1} parent=55 // pred_region
          %p719 = scmp.lt.s32.totalorder %s40, 1
          %s720 = scalar_select %p719, %s40, 1
          %s721 = scalar_lea.vmem %s13, %s720
        $region88: #{vit_forward.1} parent=55 // pred_fallthru
          _
        // Predicated region
        $region89: #{vit_forward.1} parent=55 // pred_check
          %p722 = pneg %p398
        $region90: #{vit_forward.1} parent=55 // pred_check_branch
          %724 = sbr.rel (%p722) target = $region92
        $region91: #{vit_forward.1} parent=55 // pred_region
          %p725 = scmp.lt.s32.totalorder %s40, 1
          %s726 = scalar_select %p725, %s40, 1
          %s727 = scalar_lea.vmem %s14, %s726
        $region92: #{vit_forward.1} parent=55 // pred_fallthru
          _
        // Predicated region
        $region93: #{vit_forward.1} parent=55 // pred_check
          %p728 = pneg %p424
        $region94: #{vit_forward.1} parent=55 // pred_check_branch
          %730 = sbr.rel (%p728) target = $region96
        $region95: #{vit_forward.1} parent=55 // pred_region
          %p731 = scmp.lt.s32.totalorder %s40, 1
          %s732 = scalar_select %p731, %s40, 1
          %s733 = smul.addr %s732, 32
          %s734 = smul.addr %s733, 4
          %s735 = scalar_lea.vmem %s15, %s734
        $region96: #{vit_forward.1} parent=55 // pred_fallthru
          _
        // Predicated region
        $region97: #{vit_forward.1} parent=55 // pred_check
          %p736 = pneg %p450
        $region98: #{vit_forward.1} parent=55 // pred_check_branch
          %738 = sbr.rel (%p736) target = $region100
        $region99: #{vit_forward.1} parent=55 // pred_region
          %p739 = scmp.lt.s32.totalorder %s40, 1
          %s740 = scalar_select %p739, %s40, 1
          %s741 = smul.addr %s740, 2
          %s742 = scalar_lea.vmem %s16, %s741
        $region100: #{vit_forward.1} parent=55 // pred_fallthru
          _
        // Predicated region
        $region101: #{vit_forward.1} parent=55 // pred_check
          %p743 = pneg %p476
        $region102: #{vit_forward.1} parent=55 // pred_check_branch
          %745 = sbr.rel (%p743) target = $region104
        $region103: #{vit_forward.1} parent=55 // pred_region
          %p746 = scmp.lt.s32.totalorder %s40, 1
          %s747 = scalar_select %p746, %s40, 1
          %s748 = smul.addr %s747, 32
          %s749 = smul.addr %s748, 4
          %s750 = scalar_lea.vmem %s17, %s749
        $region104: #{vit_forward.1} parent=55 // pred_fallthru
          _
        // Predicated region
        $region105: #{vit_forward.1} parent=55 // pred_check
          %p751 = pneg %p502
        $region106: #{vit_forward.1} parent=55 // pred_check_branch
          %753 = sbr.rel (%p751) target = $region108
        $region107: #{vit_forward.1} parent=55 // pred_region
          %p754 = scmp.lt.s32.totalorder %s40, 1
          %s755 = scalar_select %p754, %s40, 1
          %s756 = scalar_lea.vmem %s18, %s755
        $region108: #{vit_forward.1} parent=55 // pred_fallthru
          _
      $region56: #{vit_forward.1} parent=5 // pred_fallthru
        _
      %p757 = scmp.le.s32.totalorder 1, %s32
      %p758 = scmp.lt.s32.totalorder %s32, 5
      %p759 = pnand %p757, %p758
      %p760 = pneg %p759
      // Predicated region
      $region109: #{vit_forward.1} parent=5 // pred_check
        _
      $region110: #{vit_forward.1} parent=5 // pred_check_branch
        %762 = sbr.rel (%p759) target = $region112
      $region111: #{vit_forward.1} parent=5 // pred_region
        %s763 = ssub.s32 %s32, 1
        %p764 = scmp.lt.s32.totalorder %s41, 1
        %s765 = scalar_select %p764, %s41, 1
        %s766 = smul.addr %s765, 6
        %s767 = smul.addr %s766, 4
        %s768 = scalar_lea.vmem %s0, %s767
        %p769 = pneg %p70
        %p770 = pneg %p67
        %p771 = pneg %p91
        %p772 = pneg %p88
        %p773 = pneg %p112
        %p774 = pneg %p109
        %p775 = pneg %p133
        %p776 = pneg %p130
        %p777 = pneg %p154
        %p778 = pneg %p151
        %p779 = pneg %p175
        %p780 = pneg %p172
        %p781 = pneg %p196
        %p782 = pneg %p193
        %p783 = scmp.lt.s32.totalorder %s42, 1
        %s784 = scalar_select %p783, %s42, 1
        %s785 = scalar_lea.vmem %s7, %s784
        %p786 = pneg %p222
        %p787 = pneg %p219
        %p788 = scmp.lt.s32.totalorder %s42, 1
        %s789 = scalar_select %p788, %s42, 1
        %s790 = scalar_lea.vmem %s8, %s789
        %p791 = pneg %p248
        %p792 = pneg %p245
        %p793 = scmp.lt.s32.totalorder %s42, 1
        %s794 = scalar_select %p793, %s42, 1
        %s795 = smul.addr %s794, 48
        %s796 = smul.addr %s795, 4
        %s797 = scalar_lea.vmem %s9, %s796
        %p798 = pneg %p274
        %p799 = pneg %p271
        %p800 = scmp.lt.s32.totalorder %s42, 1
        %s801 = scalar_select %p800, %s42, 1
        %s802 = smul.addr %s801, 3
        %s803 = scalar_lea.vmem %s10, %s802
        %p804 = pneg %p300
        %p805 = pneg %p297
        %p806 = scmp.lt.s32.totalorder %s42, 1
        %s807 = scalar_select %p806, %s42, 1
        %s808 = smul.addr %s807, 16
        %s809 = smul.addr %s808, 4
        %s810 = scalar_lea.vmem %s11, %s809
        %p811 = pneg %p326
        %p812 = pneg %p323
        %p813 = scmp.lt.s32.totalorder %s42, 1
        %s814 = scalar_select %p813, %s42, 1
        %s815 = scalar_lea.vmem %s12, %s814
        %p816 = pneg %p352
        %p817 = pneg %p349
        %p818 = scmp.lt.s32.totalorder %s42, 1
        %s819 = scalar_select %p818, %s42, 1
        %s820 = scalar_lea.vmem %s13, %s819
        %p821 = pneg %p378
        %p822 = pneg %p375
        %p823 = scmp.lt.s32.totalorder %s42, 1
        %s824 = scalar_select %p823, %s42, 1
        %s825 = scalar_lea.vmem %s14, %s824
        %p826 = pneg %p404
        %p827 = pneg %p401
        %p828 = scmp.lt.s32.totalorder %s42, 1
        %s829 = scalar_select %p828, %s42, 1
        %s830 = smul.addr %s829, 32
        %s831 = smul.addr %s830, 4
        %s832 = scalar_lea.vmem %s15, %s831
        %p833 = pneg %p430
        %p834 = pneg %p427
        %p835 = scmp.lt.s32.totalorder %s42, 1
        %s836 = scalar_select %p835, %s42, 1
        %s837 = smul.addr %s836, 2
        %s838 = scalar_lea.vmem %s16, %s837
        %p839 = pneg %p456
        %p840 = pneg %p453
        %p841 = scmp.lt.s32.totalorder %s42, 1
        %s842 = scalar_select %p841, %s42, 1
        %s843 = smul.addr %s842, 32
        %s844 = smul.addr %s843, 4
        %s845 = scalar_lea.vmem %s17, %s844
        %p846 = pneg %p482
        %p847 = pneg %p479
        %p848 = scmp.lt.s32.totalorder %s42, 1
        %s849 = scalar_select %p848, %s42, 1
        %s850 = scalar_lea.vmem %s18, %s849
        %p851 = pneg %p508
        %p852 = pneg %p505
        %p853 = pneg %p529
        %p854 = pneg %p526
        %p855 = pneg %p550
        %p856 = pneg %p547
        %p857 = pneg %p571
        %p858 = pneg %p568
        %p859 = pneg %p592
        %p860 = pneg %p589
        %p861 = pneg %p618
        %p862 = pneg %p615
        %s863 = sand.u32 %s605, 1
        %s864 = scalar_lea.sflag [#allocation4], %s863
        %s865 = sand.u32 %s605, 1
        %s866 = scalar_lea.vmem [#allocation3], %s865
        %p867 = scmp.lt.s32.totalorder %s41, 1
        %s868 = scalar_select %p867, %s41, 1
        %s869 = smul.addr %s868, 6
        %s870 = smul.addr %s869, 4
        %s871 = scalar_lea.vmem %s0, %s870
        %p872 = scmp.lt.s32.totalorder %s42, 1
        %s873 = scalar_select %p872, %s42, 1
        %s874 = scalar_lea.vmem %s7, %s873
        %p875 = scmp.lt.s32.totalorder %s42, 1
        %s876 = scalar_select %p875, %s42, 1
        %s877 = scalar_lea.vmem %s8, %s876
        %p878 = scmp.lt.s32.totalorder %s42, 1
        %s879 = scalar_select %p878, %s42, 1
        %s880 = smul.addr %s879, 48
        %s881 = smul.addr %s880, 4
        %s882 = scalar_lea.vmem %s9, %s881
        %p883 = scmp.lt.s32.totalorder %s42, 1
        %s884 = scalar_select %p883, %s42, 1
        %s885 = smul.addr %s884, 3
        %s886 = scalar_lea.vmem %s10, %s885
        %p887 = scmp.lt.s32.totalorder %s42, 1
        %s888 = scalar_select %p887, %s42, 1
        %s889 = smul.addr %s888, 16
        %s890 = smul.addr %s889, 4
        %s891 = scalar_lea.vmem %s11, %s890
        %p892 = scmp.lt.s32.totalorder %s42, 1
        %s893 = scalar_select %p892, %s42, 1
        %s894 = scalar_lea.vmem %s12, %s893
        %p895 = scmp.lt.s32.totalorder %s42, 1
        %s896 = scalar_select %p895, %s42, 1
        %s897 = scalar_lea.vmem %s13, %s896
        %p898 = scmp.lt.s32.totalorder %s42, 1
        %s899 = scalar_select %p898, %s42, 1
        %s900 = scalar_lea.vmem %s14, %s899
        %p901 = scmp.lt.s32.totalorder %s42, 1
        %s902 = scalar_select %p901, %s42, 1
        %s903 = smul.addr %s902, 32
        %s904 = smul.addr %s903, 4
        %s905 = scalar_lea.vmem %s15, %s904
        %p906 = scmp.lt.s32.totalorder %s42, 1
        %s907 = scalar_select %p906, %s42, 1
        %s908 = smul.addr %s907, 2
        %s909 = scalar_lea.vmem %s16, %s908
        %p910 = scmp.lt.s32.totalorder %s42, 1
        %s911 = scalar_select %p910, %s42, 1
        %s912 = smul.addr %s911, 32
        %s913 = smul.addr %s912, 4
        %s914 = scalar_lea.vmem %s17, %s913
        %p915 = scmp.lt.s32.totalorder %s42, 1
        %s916 = scalar_select %p915, %s42, 1
        %s917 = scalar_lea.vmem %s18, %s916
        %p919 = scmp.eq.s32.totalorder %s42, 0
        // Predicated region
        $region113: #{vit_forward.1} parent=111 // pred_check
          %p920 = pneg %p919
        $region114: #{vit_forward.1} parent=111 // pred_check_branch
          %922 = sbr.rel (%p920) target = $region116
        $region115: #{vit_forward.1} parent=111 // pred_region
          %v923 = vld [vmem:[%s871] sm:$0xff]
          %v924 = vld [vmem:[%s871 + $0x8] sm:$0xff]
          %v925 = vld [vmem:[%s871 + $0x10] sm:$0xff]
          %v929 = vcombine.high %v923, %v923
          %v930 = vcombine.high %v924, %v924
          %v931 = vcombine.high %v925, %v925
          %v935 = vpack.c.bf16 %v923, %v923
          %v936 = vpack.c.bf16 %v929, %v929
          %v937 = vpack.c.bf16 %v924, %v924
          %v938 = vpack.c.bf16 %v930, %v930
          %v939 = vpack.c.bf16 %v925, %v925
          %v940 = vpack.c.bf16 %v931, %v931
          %v941 = vld [vmem:[%s1] sm:$0xf]
          %v942 = vld [vmem:[%s1 + $0x4] sm:$0xf]
          %v943 = vld [vmem:[%s1 + $0x8] sm:$0xf]
          %v944 = vld [vmem:[%s1 + $0xc] sm:$0xf]
          %v945 = vld [vmem:[%s1 + $0x10] sm:$0xf]
          %v946 = vld [vmem:[%s1 + $0x14] sm:$0xf]
          %v947 = vld [vmem:[%s1 + $0x18] sm:$0xf]
          %v948 = vld [vmem:[%s1 + $0x1c] sm:$0xf]
          %v949 = vld [vmem:[%s1 + $0x20] sm:$0xf]
          %v950 = vld [vmem:[%s1 + $0x24] sm:$0xf]
          %v951 = vld [vmem:[%s1 + $0x28] sm:$0xf]
          %v952 = vld [vmem:[%s1 + $0x2c] sm:$0xf]
          %v953 = vld [vmem:[%s1 + $0x30] sm:$0xf]
          %v954 = vld [vmem:[%s1 + $0x34] sm:$0xf]
          %v955 = vld [vmem:[%s1 + $0x38] sm:$0xf]
          %v956 = vld [vmem:[%s1 + $0x3c] sm:$0xf]
          %v957 = vld [vmem:[%s1 + $0x40] sm:$0xf]
          %v958 = vld [vmem:[%s1 + $0x44] sm:$0xf]
          %v959 = vld [vmem:[%s1 + $0x48] sm:$0xf]
          %v960 = vld [vmem:[%s1 + $0x4c] sm:$0xf]
          %v961 = vld [vmem:[%s1 + $0x50] sm:$0xf]
          %v962 = vld [vmem:[%s1 + $0x54] sm:$0xf]
          %v963 = vld [vmem:[%s1 + $0x58] sm:$0xf]
          %v964 = vld [vmem:[%s1 + $0x5c] sm:$0xf]
          %v965 = vld [vmem:[%s1 + $0x60] sm:$0xf]
          %v966 = vld [vmem:[%s1 + $0x64] sm:$0xf]
          %v967 = vld [vmem:[%s1 + $0x68] sm:$0xf]
          %v968 = vld [vmem:[%s1 + $0x6c] sm:$0xf]
          %v969 = vld [vmem:[%s1 + $0x70] sm:$0xf]
          %v970 = vld [vmem:[%s1 + $0x74] sm:$0xf]
          %v971 = vld [vmem:[%s1 + $0x78] sm:$0xf]
          %v972 = vld [vmem:[%s1 + $0x7c] sm:$0xf]
          %v973 = vld [vmem:[%s1 + $0x80] sm:$0xf]
          %v974 = vld [vmem:[%s1 + $0x84] sm:$0xf]
          %v975 = vld [vmem:[%s1 + $0x88] sm:$0xf]
          %v976 = vld [vmem:[%s1 + $0x8c] sm:$0xf]
          %v977 = vld [vmem:[%s1 + $0x90] sm:$0xf]
          %v978 = vld [vmem:[%s1 + $0x94] sm:$0xf]
          %v979 = vld [vmem:[%s1 + $0x98] sm:$0xf]
          %v980 = vld [vmem:[%s1 + $0x9c] sm:$0xf]
          %v981 = vld [vmem:[%s1 + $0xa0] sm:$0xf]
          %v982 = vld [vmem:[%s1 + $0xa4] sm:$0xf]
          %v983 = vld [vmem:[%s1 + $0xa8] sm:$0xf]
          %v984 = vld [vmem:[%s1 + $0xac] sm:$0xf]
          %v985 = vld [vmem:[%s1 + $0xb0] sm:$0xf]
          %v986 = vld [vmem:[%s1 + $0xb4] sm:$0xf]
          %v987 = vld [vmem:[%s1 + $0xb8] sm:$0xf]
          %v988 = vld [vmem:[%s1 + $0xbc] sm:$0xf]
          %v989 = vld [vmem:[%s1 + $0xc0] sm:$0xf]
          %v990 = vld [vmem:[%s1 + $0xc4] sm:$0xf]
          %v991 = vld [vmem:[%s1 + $0xc8] sm:$0xf]
          %v992 = vld [vmem:[%s1 + $0xcc] sm:$0xf]
          %v993 = vld [vmem:[%s1 + $0xd0] sm:$0xf]
          %v994 = vld [vmem:[%s1 + $0xd4] sm:$0xf]
          %v995 = vld [vmem:[%s1 + $0xd8] sm:$0xf]
          %v996 = vld [vmem:[%s1 + $0xdc] sm:$0xf]
          %v997 = vld [vmem:[%s1 + $0xe0] sm:$0xf]
          %v998 = vld [vmem:[%s1 + $0xe4] sm:$0xf]
          %v999 = vld [vmem:[%s1 + $0xe8] sm:$0xf]
          %v1000 = vld [vmem:[%s1 + $0xec] sm:$0xf]
          %v1001 = vld [vmem:[%s1 + $0xf0] sm:$0xf]
          %v1002 = vld [vmem:[%s1 + $0xf4] sm:$0xf]
          %v1003 = vld [vmem:[%s1 + $0xf8] sm:$0xf]
          %v1004 = vld [vmem:[%s1 + $0xfc] sm:$0xf]
          %v1005 = vld [vmem:[%s1 + $0x100] sm:$0xf]
          %v1006 = vld [vmem:[%s1 + $0x104] sm:$0xf]
          %v1007 = vld [vmem:[%s1 + $0x108] sm:$0xf]
          %v1008 = vld [vmem:[%s1 + $0x10c] sm:$0xf]
          %v1009 = vld [vmem:[%s1 + $0x110] sm:$0xf]
          %v1010 = vld [vmem:[%s1 + $0x114] sm:$0xf]
          %v1011 = vld [vmem:[%s1 + $0x118] sm:$0xf]
          %v1012 = vld [vmem:[%s1 + $0x11c] sm:$0xf]
          %v1013 = vld [vmem:[%s1 + $0x120] sm:$0xf]
          %v1014 = vld [vmem:[%s1 + $0x124] sm:$0xf]
          %v1015 = vld [vmem:[%s1 + $0x128] sm:$0xf]
          %v1016 = vld [vmem:[%s1 + $0x12c] sm:$0xf]
          %v1017 = vld [vmem:[%s1 + $0x130] sm:$0xf]
          %v1018 = vld [vmem:[%s1 + $0x134] sm:$0xf]
          %v1019 = vld [vmem:[%s1 + $0x138] sm:$0xf]
          %v1020 = vld [vmem:[%s1 + $0x13c] sm:$0xf]
          %v1021 = vld [vmem:[%s1 + $0x140] sm:$0xf]
          %v1022 = vld [vmem:[%s1 + $0x144] sm:$0xf]
          %v1023 = vld [vmem:[%s1 + $0x148] sm:$0xf]
          %v1024 = vld [vmem:[%s1 + $0x14c] sm:$0xf]
          %v1025 = vld [vmem:[%s1 + $0x150] sm:$0xf]
          %v1026 = vld [vmem:[%s1 + $0x154] sm:$0xf]
          %v1027 = vld [vmem:[%s1 + $0x158] sm:$0xf]
          %v1028 = vld [vmem:[%s1 + $0x15c] sm:$0xf]
          %v1029 = vld [vmem:[%s1 + $0x160] sm:$0xf]
          %v1030 = vld [vmem:[%s1 + $0x164] sm:$0xf]
          %v1031 = vld [vmem:[%s1 + $0x168] sm:$0xf]
          %v1032 = vld [vmem:[%s1 + $0x16c] sm:$0xf]
          %v1033 = vld [vmem:[%s1 + $0x170] sm:$0xf]
          %v1034 = vld [vmem:[%s1 + $0x174] sm:$0xf]
          %v1035 = vld [vmem:[%s1 + $0x178] sm:$0xf]
          %v1036 = vld [vmem:[%s1 + $0x17c] sm:$0xf]
          %v1037 = vld [vmem:[%s2] sm:$0x1]
          %v1039 = vlaneseq
          %v1040 = vshrl.u32 %v1039, 7
          %v1041 = vsub.s32 0, %v1040
          %v1042 = vrot.slane %v1037, %v1041
          %v1140 = vunpack.c.l.b16 %v941
          %v1141 = vunpack.c.l.b16 %v942
          %v1142 = vunpack.c.l.b16 %v943
          %v1143 = vunpack.c.l.b16 %v944
          %v1144 = vunpack.c.l.b16 %v945
          %v1145 = vunpack.c.l.b16 %v946
          %v1146 = vunpack.c.l.b16 %v947
          %v1147 = vunpack.c.l.b16 %v948
          %v1148 = vunpack.c.l.b16 %v949
          %v1149 = vunpack.c.l.b16 %v950
          %v1150 = vunpack.c.l.b16 %v951
          %v1151 = vunpack.c.l.b16 %v952
          %v1152 = vunpack.c.l.b16 %v953
          %v1153 = vunpack.c.l.b16 %v954
          %v1154 = vunpack.c.l.b16 %v955
          %v1155 = vunpack.c.l.b16 %v956
          %v1156 = vunpack.c.l.b16 %v957
          %v1157 = vunpack.c.l.b16 %v958
          %v1158 = vunpack.c.l.b16 %v959
          %v1159 = vunpack.c.l.b16 %v960
          %v1160 = vunpack.c.l.b16 %v961
          %v1161 = vunpack.c.l.b16 %v962
          %v1162 = vunpack.c.l.b16 %v963
          %v1163 = vunpack.c.l.b16 %v964
          %v1164 = vunpack.c.l.b16 %v965
          %v1165 = vunpack.c.l.b16 %v966
          %v1166 = vunpack.c.l.b16 %v967
          %v1167 = vunpack.c.l.b16 %v968
          %v1168 = vunpack.c.l.b16 %v969
          %v1169 = vunpack.c.l.b16 %v970
          %v1170 = vunpack.c.l.b16 %v971
          %v1171 = vunpack.c.l.b16 %v972
          %v1172 = vunpack.c.l.b16 %v973
          %v1173 = vunpack.c.l.b16 %v974
          %v1174 = vunpack.c.l.b16 %v975
          %v1175 = vunpack.c.l.b16 %v976
          %v1176 = vunpack.c.l.b16 %v977
          %v1177 = vunpack.c.l.b16 %v978
          %v1178 = vunpack.c.l.b16 %v979
          %v1179 = vunpack.c.l.b16 %v980
          %v1180 = vunpack.c.l.b16 %v981
          %v1181 = vunpack.c.l.b16 %v982
          %v1182 = vunpack.c.l.b16 %v983
          %v1183 = vunpack.c.l.b16 %v984
          %v1184 = vunpack.c.l.b16 %v985
          %v1185 = vunpack.c.l.b16 %v986
          %v1186 = vunpack.c.l.b16 %v987
          %v1187 = vunpack.c.l.b16 %v988
          %v1188 = vunpack.c.l.b16 %v989
          %v1189 = vunpack.c.l.b16 %v990
          %v1190 = vunpack.c.l.b16 %v991
          %v1191 = vunpack.c.l.b16 %v992
          %v1192 = vunpack.c.l.b16 %v993
          %v1193 = vunpack.c.l.b16 %v994
          %v1194 = vunpack.c.l.b16 %v995
          %v1195 = vunpack.c.l.b16 %v996
          %v1196 = vunpack.c.l.b16 %v997
          %v1197 = vunpack.c.l.b16 %v998
          %v1198 = vunpack.c.l.b16 %v999
          %v1199 = vunpack.c.l.b16 %v1000
          %v1200 = vunpack.c.l.b16 %v1001
          %v1201 = vunpack.c.l.b16 %v1002
          %v1202 = vunpack.c.l.b16 %v1003
          %v1203 = vunpack.c.l.b16 %v1004
          %v1204 = vunpack.c.l.b16 %v1005
          %v1205 = vunpack.c.l.b16 %v1006
          %v1206 = vunpack.c.l.b16 %v1007
          %v1207 = vunpack.c.l.b16 %v1008
          %v1208 = vunpack.c.l.b16 %v1009
          %v1209 = vunpack.c.l.b16 %v1010
          %v1210 = vunpack.c.l.b16 %v1011
          %v1211 = vunpack.c.l.b16 %v1012
          %v1212 = vunpack.c.l.b16 %v1013
          %v1213 = vunpack.c.l.b16 %v1014
          %v1214 = vunpack.c.l.b16 %v1015
          %v1215 = vunpack.c.l.b16 %v1016
          %v1216 = vunpack.c.l.b16 %v1017
          %v1217 = vunpack.c.l.b16 %v1018
          %v1218 = vunpack.c.l.b16 %v1019
          %v1219 = vunpack.c.l.b16 %v1020
          %v1220 = vunpack.c.l.b16 %v1021
          %v1221 = vunpack.c.l.b16 %v1022
          %v1222 = vunpack.c.l.b16 %v1023
          %v1223 = vunpack.c.l.b16 %v1024
          %v1224 = vunpack.c.l.b16 %v1025
          %v1225 = vunpack.c.l.b16 %v1026
          %v1226 = vunpack.c.l.b16 %v1027
          %v1227 = vunpack.c.l.b16 %v1028
          %v1228 = vunpack.c.l.b16 %v1029
          %v1229 = vunpack.c.l.b16 %v1030
          %v1230 = vunpack.c.l.b16 %v1031
          %v1231 = vunpack.c.l.b16 %v1032
          %v1232 = vunpack.c.l.b16 %v1033
          %v1233 = vunpack.c.l.b16 %v1034
          %v1234 = vunpack.c.l.b16 %v1035
          %v1235 = vunpack.c.l.b16 %v1036
          %v1236 = vpack.c.b16 %v1141, %v1140
          %v1237 = vpack.c.b16 %v1143, %v1142
          %v1238 = vpack.c.b16 %v1145, %v1144
          %v1239 = vpack.c.b16 %v1147, %v1146
          %v1240 = vpack.c.b16 %v1149, %v1148
          %v1241 = vpack.c.b16 %v1151, %v1150
          %v1242 = vpack.c.b16 %v1153, %v1152
          %v1243 = vpack.c.b16 %v1155, %v1154
          %v1244 = vpack.c.b16 %v1157, %v1156
          %v1245 = vpack.c.b16 %v1159, %v1158
          %v1246 = vpack.c.b16 %v1161, %v1160
          %v1247 = vpack.c.b16 %v1163, %v1162
          %v1248 = vpack.c.b16 %v1165, %v1164
          %v1249 = vpack.c.b16 %v1167, %v1166
          %v1250 = vpack.c.b16 %v1169, %v1168
          %v1251 = vpack.c.b16 %v1171, %v1170
          %v1252 = vpack.c.b16 %v1173, %v1172
          %v1253 = vpack.c.b16 %v1175, %v1174
          %v1254 = vpack.c.b16 %v1177, %v1176
          %v1255 = vpack.c.b16 %v1179, %v1178
          %v1256 = vpack.c.b16 %v1181, %v1180
          %v1257 = vpack.c.b16 %v1183, %v1182
          %v1258 = vpack.c.b16 %v1185, %v1184
          %v1259 = vpack.c.b16 %v1187, %v1186
          %v1260 = vpack.c.b16 %v1189, %v1188
          %v1261 = vpack.c.b16 %v1191, %v1190
          %v1262 = vpack.c.b16 %v1193, %v1192
          %v1263 = vpack.c.b16 %v1195, %v1194
          %v1264 = vpack.c.b16 %v1197, %v1196
          %v1265 = vpack.c.b16 %v1199, %v1198
          %v1266 = vpack.c.b16 %v1201, %v1200
          %v1267 = vpack.c.b16 %v1203, %v1202
          %v1268 = vpack.c.b16 %v1205, %v1204
          %v1269 = vpack.c.b16 %v1207, %v1206
          %v1270 = vpack.c.b16 %v1209, %v1208
          %v1271 = vpack.c.b16 %v1211, %v1210
          %v1272 = vpack.c.b16 %v1213, %v1212
          %v1273 = vpack.c.b16 %v1215, %v1214
          %v1274 = vpack.c.b16 %v1217, %v1216
          %v1275 = vpack.c.b16 %v1219, %v1218
          %v1276 = vpack.c.b16 %v1221, %v1220
          %v1277 = vpack.c.b16 %v1223, %v1222
          %v1278 = vpack.c.b16 %v1225, %v1224
          %v1279 = vpack.c.b16 %v1227, %v1226
          %v1280 = vpack.c.b16 %v1229, %v1228
          %v1281 = vpack.c.b16 %v1231, %v1230
          %v1282 = vpack.c.b16 %v1233, %v1232
          %v1283 = vpack.c.b16 %v1235, %v1234
          %1332 = vmatprep.subr.bf16.mxu0 0
          %1333 = vmatpush1.bf16.msra.mxu0 %v1243
          %1334 = vmatprep.subr.bf16.mxu0 0
          %1335 = vmatpush1.bf16.msra.mxu0 %v1242
          %1336 = vmatprep.subr.bf16.mxu0 0
          %1337 = vmatpush1.bf16.msra.mxu0 %v1241
          %1338 = vmatprep.subr.bf16.mxu0 0
          %1339 = vmatpush1.bf16.msra.mxu0 %v1240
          %1340 = vmatprep.subr.bf16.mxu0 0
          %1341 = vmatpush1.bf16.msra.mxu0 %v1239
          %1342 = vmatprep.subr.bf16.mxu0 0
          %1343 = vmatpush1.bf16.msra.mxu0 %v1238
          %1344 = vmatprep.subr.bf16.mxu0 0
          %1345 = vmatpush1.bf16.msra.mxu0 %v1237
          %1346 = vmatprep.subr.bf16.mxu0 0
          %1347 = vmatpush1.bf16.msra.mxu0 %v1236
          %1348 = vmatprep.subr.bf16.mxu0 0
          %1349 = vmatpush2.bf16.msra.mxu0 %v1251
          %1350 = vmatprep.subr.bf16.mxu0 0
          %1351 = vmatpush2.bf16.msra.mxu0 %v1250
          %1352 = vmatprep.subr.bf16.mxu0 0
          %1353 = vmatpush2.bf16.msra.mxu0 %v1249
          %1354 = vmatprep.subr.bf16.mxu0 0
          %1355 = vmatpush2.bf16.msra.mxu0 %v1248
          %1356 = vmatprep.subr.bf16.mxu0 0
          %1357 = vmatpush2.bf16.msra.mxu0 %v1247
          %1358 = vmatprep.subr.bf16.mxu0 0
          %1359 = vmatpush2.bf16.msra.mxu0 %v1246
          %1360 = vmatprep.subr.bf16.mxu0 0
          %1361 = vmatpush2.bf16.msra.mxu0 %v1245
          %1362 = vmatprep.subr.bf16.mxu0 0
          %1363 = vmatpush2.bf16.msra.mxu0 %v1244
          %1364 = vmatprep.mubr.bf16.mxu0 %v936
          %1365 = vmatmul.mubr.bf16.gmra.mxu0 %v935
          %v1366 = vpop.f32.mrf.mxu0
          %v1367 = vadd.f32 %v1042, %v1366
          %v1368 = vpop.f32.mrf.mxu0
          %v1369 = vpop.f32.mrf.mxu0
          %v1370 = vpop.f32.mrf.mxu0
          %1371 = vdwg.mxu0
          %1372 = vmatprep.subr.bf16.mxu0 0
          %1373 = vmatpush1.bf16.msra.mxu0 %v1259
          %1374 = vmatprep.subr.bf16.mxu0 0
          %1375 = vmatpush1.bf16.msra.mxu0 %v1258
          %1376 = vmatprep.subr.bf16.mxu0 0
          %1377 = vmatpush1.bf16.msra.mxu0 %v1257
          %1378 = vmatprep.subr.bf16.mxu0 0
          %1379 = vmatpush1.bf16.msra.mxu0 %v1256
          %1380 = vmatprep.subr.bf16.mxu0 0
          %1381 = vmatpush1.bf16.msra.mxu0 %v1255
          %1382 = vmatprep.subr.bf16.mxu0 0
          %1383 = vmatpush1.bf16.msra.mxu0 %v1254
          %1384 = vmatprep.subr.bf16.mxu0 0
          %1385 = vmatpush1.bf16.msra.mxu0 %v1253
          %1386 = vmatprep.subr.bf16.mxu0 0
          %1387 = vmatpush1.bf16.msra.mxu0 %v1252
          %1388 = vmatprep.subr.bf16.mxu0 0
          %1389 = vmatpush2.bf16.msra.mxu0 %v1267
          %1390 = vmatprep.subr.bf16.mxu0 0
          %1391 = vmatpush2.bf16.msra.mxu0 %v1266
          %1392 = vmatprep.subr.bf16.mxu0 0
          %1393 = vmatpush2.bf16.msra.mxu0 %v1265
          %1394 = vmatprep.subr.bf16.mxu0 0
          %1395 = vmatpush2.bf16.msra.mxu0 %v1264
          %1396 = vmatprep.subr.bf16.mxu0 0
          %1397 = vmatpush2.bf16.msra.mxu0 %v1263
          %1398 = vmatprep.subr.bf16.mxu0 0
          %1399 = vmatpush2.bf16.msra.mxu0 %v1262
          %1400 = vmatprep.subr.bf16.mxu0 0
          %1401 = vmatpush2.bf16.msra.mxu0 %v1261
          %1402 = vmatprep.subr.bf16.mxu0 0
          %1403 = vmatpush2.bf16.msra.mxu0 %v1260
          %1404 = vmatprep.mubr.bf16.mxu0 %v938
          %1405 = vmatmul.mubr.bf16.gmra.mxu0 %v937
          %v1406 = vpop.f32.mrf.mxu0
          %v1407 = vadd.f32 %v1367, %v1406
          %v1408 = vpop.f32.mrf.mxu0
          %v1409 = vpop.f32.mrf.mxu0
          %v1410 = vpop.f32.mrf.mxu0
          %1411 = vdwg.mxu0
          %1412 = vmatprep.subr.bf16.mxu0 0
          %1413 = vmatpush1.bf16.msra.mxu0 %v1275
          %1414 = vmatprep.subr.bf16.mxu0 0
          %1415 = vmatpush1.bf16.msra.mxu0 %v1274
          %1416 = vmatprep.subr.bf16.mxu0 0
          %1417 = vmatpush1.bf16.msra.mxu0 %v1273
          %1418 = vmatprep.subr.bf16.mxu0 0
          %1419 = vmatpush1.bf16.msra.mxu0 %v1272
          %1420 = vmatprep.subr.bf16.mxu0 0
          %1421 = vmatpush1.bf16.msra.mxu0 %v1271
          %1422 = vmatprep.subr.bf16.mxu0 0
          %1423 = vmatpush1.bf16.msra.mxu0 %v1270
          %1424 = vmatprep.subr.bf16.mxu0 0
          %1425 = vmatpush1.bf16.msra.mxu0 %v1269
          %1426 = vmatprep.subr.bf16.mxu0 0
          %1427 = vmatpush1.bf16.msra.mxu0 %v1268
          %1428 = vmatprep.subr.bf16.mxu0 0
          %1429 = vmatpush2.bf16.msra.mxu0 %v1283
          %1430 = vmatprep.subr.bf16.mxu0 0
          %1431 = vmatpush2.bf16.msra.mxu0 %v1282
          %1432 = vmatprep.subr.bf16.mxu0 0
          %1433 = vmatpush2.bf16.msra.mxu0 %v1281
          %1434 = vmatprep.subr.bf16.mxu0 0
          %1435 = vmatpush2.bf16.msra.mxu0 %v1280
          %1436 = vmatprep.subr.bf16.mxu0 0
          %1437 = vmatpush2.bf16.msra.mxu0 %v1279
          %1438 = vmatprep.subr.bf16.mxu0 0
          %1439 = vmatpush2.bf16.msra.mxu0 %v1278
          %1440 = vmatprep.subr.bf16.mxu0 0
          %1441 = vmatpush2.bf16.msra.mxu0 %v1277
          %1442 = vmatprep.subr.bf16.mxu0 0
          %1443 = vmatpush2.bf16.msra.mxu0 %v1276
          %1444 = vmatprep.mubr.bf16.mxu0 %v940
          %1445 = vmatmul.mubr.bf16.gmra.mxu0 %v939
          %v1446 = vpop.f32.mrf.mxu0
          %v1447 = vadd.f32 %v1407, %v1446
          %v1448 = vpop.f32.mrf.mxu0
          %v1449 = vpop.f32.mrf.mxu0
          %v1450 = vpop.f32.mrf.mxu0
          %1451 = vdwg.mxu0
          %1452 = vst [vmem:[#allocation2] sm:$0xff] 0.0
          %v1453 = vld [vmem:[%s3] sm:$0x1]
          %v1454 = vld [vmem:[%s4] sm:$0x1]
          %v1455 = vadd.f32 %v1453, %v1454
          %1456 = vst [vmem:[#allocation2] sm:$0x1] %v1455
          %v1457 = vld [vmem:[%s4 + $0x1] sm:$0xf]
          %v1458 = vadd.f32 %v1447, %v1457
          %1459 = vst [vmem:[#allocation2 + $0x1] sm:$0xf] %v1458
        $region116: #{vit_forward.1} parent=111 // pred_fallthru
          _
        %v1460 = vld [vmem:[#allocation2] sm:$0xff]
        %v1461 = vld [vmem:[%s874] sm:$0x1]
        %v1462 = vld [vmem:[%s877] sm:$0x1]
        %1463 = vadd.xlane.f32.xlu0 %v1460
        %v1464 = vpop.xlane.xlu0 %1463
        %v1465 = vrcp.pop 128.0
        %v1466 = vmul.f32 %v1464, %v1465
        %v1467 = vsub.f32 %v1460, %v1466
        %v1468 = vmul.f32 %v1467, %v1467
        %1469 = vadd.xlane.f32.xlu0 %v1468
        %v1470 = vpop.xlane.xlu0 %1469
        %v1471 = vmul.f32 %v1470, %v1465
        %v1472 = vadd.f32 %v1471, 1e-12
        %v1473 = vrsqrt.pop %v1472
        %v1474 = vmul.f32 %v1467, %v1473
        %v1476 = vlaneseq
        %v1477 = vshrl.u32 %v1476, 7
        %v1478 = vsub.s32 0, %v1477
        %v1479 = vrot.slane %v1461, %v1478
        %v1481 = vmul.f32 %v1474, %v1479
        %v1483 = vlaneseq
        %v1484 = vshrl.u32 %v1483, 7
        %v1485 = vsub.s32 0, %v1484
        %v1486 = vrot.slane %v1462, %v1485
        %v1488 = vadd.f32 %v1481, %v1486
        %v1489 = vpack.c.bf16 %v1488, %v1488
        %v1490 = vld [vmem:[%s882] sm:$0xff]
        %v1491 = vld [vmem:[%s882 + $0x8] sm:$0xf]
        %v1492 = vld [vmem:[%s882 + $0xc] sm:$0xff]
        %v1493 = vld [vmem:[%s882 + $0x14] sm:$0xf]
        %v1494 = vld [vmem:[%s882 + $0x18] sm:$0xff]
        %v1495 = vld [vmem:[%s882 + $0x20] sm:$0xf]
        %v1496 = vld [vmem:[%s882 + $0x24] sm:$0xff]
        %v1497 = vld [vmem:[%s882 + $0x2c] sm:$0xf]
        %v1498 = vld [vmem:[%s882 + $0x30] sm:$0xff]
        %v1499 = vld [vmem:[%s882 + $0x38] sm:$0xf]
        %v1500 = vld [vmem:[%s882 + $0x3c] sm:$0xff]
        %v1501 = vld [vmem:[%s882 + $0x44] sm:$0xf]
        %v1502 = vld [vmem:[%s882 + $0x48] sm:$0xff]
        %v1503 = vld [vmem:[%s882 + $0x50] sm:$0xf]
        %v1504 = vld [vmem:[%s882 + $0x54] sm:$0xff]
        %v1505 = vld [vmem:[%s882 + $0x5c] sm:$0xf]
        %v1506 = vld [vmem:[%s882 + $0x60] sm:$0xff]
        %v1507 = vld [vmem:[%s882 + $0x68] sm:$0xf]
        %v1508 = vld [vmem:[%s882 + $0x6c] sm:$0xff]
        %v1509 = vld [vmem:[%s882 + $0x74] sm:$0xf]
        %v1510 = vld [vmem:[%s882 + $0x78] sm:$0xff]
        %v1511 = vld [vmem:[%s882 + $0x80] sm:$0xf]
        %v1512 = vld [vmem:[%s882 + $0x84] sm:$0xff]
        %v1513 = vld [vmem:[%s882 + $0x8c] sm:$0xf]
        %v1514 = vld [vmem:[%s882 + $0x90] sm:$0xff]
        %v1515 = vld [vmem:[%s882 + $0x98] sm:$0xf]
        %v1516 = vld [vmem:[%s882 + $0x9c] sm:$0xff]
        %v1517 = vld [vmem:[%s882 + $0xa4] sm:$0xf]
        %v1518 = vld [vmem:[%s882 + $0xa8] sm:$0xff]
        %v1519 = vld [vmem:[%s882 + $0xb0] sm:$0xf]
        %v1520 = vld [vmem:[%s882 + $0xb4] sm:$0xff]
        %v1521 = vld [vmem:[%s882 + $0xbc] sm:$0xf]
        %v1522 = vld [vmem:[%s886] sm:$0x7]
        %v1524 = vlaneseq
        %v1525 = vshrl.u32 %v1524, 7
        %v1526 = vsub.s32 0, %v1525
        %v1527 = vrot.slane %v1522, %v1526
        %v1528 = vlaneseq
        %v1529 = vshrl.u32 %v1528, 7
        %v1530 = vsub.s32 1, %v1529
        %v1531 = vrot.slane %v1522, %v1530
        %v1532 = vlaneseq
        %v1533 = vshrl.u32 %v1532, 7
        %v1534 = vsub.s32 2, %v1533
        %v1535 = vrot.slane %v1522, %v1534
        %v1571 = vunpack.c.l.b16 %v1490
        %v1572 = vunpack.c.h.b16 %v1490
        %v1573 = vunpack.c.l.b16 %v1491
        %v1574 = vunpack.c.l.b16 %v1492
        %v1575 = vunpack.c.h.b16 %v1492
        %v1576 = vunpack.c.l.b16 %v1493
        %v1577 = vunpack.c.l.b16 %v1494
        %v1578 = vunpack.c.h.b16 %v1494
        %v1579 = vunpack.c.l.b16 %v1495
        %v1580 = vunpack.c.l.b16 %v1496
        %v1581 = vunpack.c.h.b16 %v1496
        %v1582 = vunpack.c.l.b16 %v1497
        %v1583 = vunpack.c.l.b16 %v1498
        %v1584 = vunpack.c.h.b16 %v1498
        %v1585 = vunpack.c.l.b16 %v1499
        %v1586 = vunpack.c.l.b16 %v1500
        %v1587 = vunpack.c.h.b16 %v1500
        %v1588 = vunpack.c.l.b16 %v1501
        %v1589 = vunpack.c.l.b16 %v1502
        %v1590 = vunpack.c.h.b16 %v1502
        %v1591 = vunpack.c.l.b16 %v1503
        %v1592 = vunpack.c.l.b16 %v1504
        %v1593 = vunpack.c.h.b16 %v1504
        %v1594 = vunpack.c.l.b16 %v1505
        %v1595 = vunpack.c.l.b16 %v1506
        %v1596 = vunpack.c.h.b16 %v1506
        %v1597 = vunpack.c.l.b16 %v1507
        %v1598 = vunpack.c.l.b16 %v1508
        %v1599 = vunpack.c.h.b16 %v1508
        %v1600 = vunpack.c.l.b16 %v1509
        %v1601 = vunpack.c.l.b16 %v1510
        %v1602 = vunpack.c.h.b16 %v1510
        %v1603 = vunpack.c.l.b16 %v1511
        %v1604 = vunpack.c.l.b16 %v1512
        %v1605 = vunpack.c.h.b16 %v1512
        %v1606 = vunpack.c.l.b16 %v1513
        %v1607 = vunpack.c.l.b16 %v1514
        %v1608 = vunpack.c.h.b16 %v1514
        %v1609 = vunpack.c.l.b16 %v1515
        %v1610 = vunpack.c.l.b16 %v1516
        %v1611 = vunpack.c.h.b16 %v1516
        %v1612 = vunpack.c.l.b16 %v1517
        %v1613 = vunpack.c.l.b16 %v1518
        %v1614 = vunpack.c.h.b16 %v1518
        %v1615 = vunpack.c.l.b16 %v1519
        %v1616 = vunpack.c.l.b16 %v1520
        %v1617 = vunpack.c.h.b16 %v1520
        %v1618 = vunpack.c.l.b16 %v1521
        %v1619 = vpack.c.b16 %v1574, %v1571
        %v1620 = vpack.c.b16 %v1575, %v1572
        %v1621 = vpack.c.b16 %v1576, %v1573
        %v1622 = vpack.c.b16 %v1580, %v1577
        %v1623 = vpack.c.b16 %v1581, %v1578
        %v1624 = vpack.c.b16 %v1582, %v1579
        %v1625 = vpack.c.b16 %v1586, %v1583
        %v1626 = vpack.c.b16 %v1587, %v1584
        %v1627 = vpack.c.b16 %v1588, %v1585
        %v1628 = vpack.c.b16 %v1592, %v1589
        %v1629 = vpack.c.b16 %v1593, %v1590
        %v1630 = vpack.c.b16 %v1594, %v1591
        %v1631 = vpack.c.b16 %v1598, %v1595
        %v1632 = vpack.c.b16 %v1599, %v1596
        %v1633 = vpack.c.b16 %v1600, %v1597
        %v1634 = vpack.c.b16 %v1604, %v1601
        %v1635 = vpack.c.b16 %v1605, %v1602
        %v1636 = vpack.c.b16 %v1606, %v1603
        %v1637 = vpack.c.b16 %v1610, %v1607
        %v1638 = vpack.c.b16 %v1611, %v1608
        %v1639 = vpack.c.b16 %v1612, %v1609
        %v1640 = vpack.c.b16 %v1616, %v1613
        %v1641 = vpack.c.b16 %v1617, %v1614
        %v1642 = vpack.c.b16 %v1618, %v1615
        %1667 = vmatprep.subr.bf16.mxu0 %v1641
        %1668 = vmatpush1.bf16.msra.mxu0 %v1640
        %1669 = vmatprep.subr.bf16.mxu0 %v1638
        %1670 = vmatpush1.bf16.msra.mxu0 %v1637
        %1671 = vmatprep.subr.bf16.mxu0 %v1635
        %1672 = vmatpush1.bf16.msra.mxu0 %v1634
        %1673 = vmatprep.subr.bf16.mxu0 %v1632
        %1674 = vmatpush1.bf16.msra.mxu0 %v1631
        %1675 = vmatprep.subr.bf16.mxu0 %v1629
        %1676 = vmatpush1.bf16.msra.mxu0 %v1628
        %1677 = vmatprep.subr.bf16.mxu0 %v1626
        %1678 = vmatpush1.bf16.msra.mxu0 %v1625
        %1679 = vmatprep.subr.bf16.mxu0 %v1623
        %1680 = vmatpush1.bf16.msra.mxu0 %v1622
        %1681 = vmatprep.subr.bf16.mxu0 %v1620
        %1682 = vmatpush1.bf16.msra.mxu0 %v1619
        %1683 = vmatprep.subr.bf16.mxu0 0
        %1684 = vmatpush2.bf16.msra.mxu0 0
        %1685 = vmatprep.subr.bf16.mxu0 0
        %1686 = vmatpush2.bf16.msra.mxu0 0
        %1687 = vmatprep.subr.bf16.mxu0 0
        %1688 = vmatpush2.bf16.msra.mxu0 0
        %1689 = vmatprep.subr.bf16.mxu0 0
        %1690 = vmatpush2.bf16.msra.mxu0 0
        %1691 = vmatprep.subr.bf16.mxu0 0
        %1692 = vmatpush2.bf16.msra.mxu0 0
        %1693 = vmatprep.subr.bf16.mxu0 0
        %1694 = vmatpush2.bf16.msra.mxu0 0
        %1695 = vmatprep.subr.bf16.mxu0 0
        %1696 = vmatpush2.bf16.msra.mxu0 0
        %1697 = vmatprep.subr.bf16.mxu0 0
        %1698 = vmatpush2.bf16.msra.mxu0 0
        %1699 = vmatprep.mubr.bf16.mxu0 0
        %1700 = vmatmul.mubr.bf16.gmra.mxu0 %v1489
        %v1701 = vpop.f32.mrf.mxu0
        %v1702 = vadd.f32 %v1527, %v1701
        %v1703 = vpop.f32.mrf.mxu0
        %v1704 = vadd.f32 %v1531, %v1703
        %v1705 = vpop.f32.mrf.mxu0
        %v1706 = vpop.f32.mrf.mxu0
        %1707 = vdwg.mxu0
        %1708 = vmatprep.subr.bf16.mxu0 0
        %1709 = vmatpush1.bf16.msra.mxu0 %v1642
        %1710 = vmatprep.subr.bf16.mxu0 0
        %1711 = vmatpush1.bf16.msra.mxu0 %v1639
        %1712 = vmatprep.subr.bf16.mxu0 0
        %1713 = vmatpush1.bf16.msra.mxu0 %v1636
        %1714 = vmatprep.subr.bf16.mxu0 0
        %1715 = vmatpush1.bf16.msra.mxu0 %v1633
        %1716 = vmatprep.subr.bf16.mxu0 0
        %1717 = vmatpush1.bf16.msra.mxu0 %v1630
        %1718 = vmatprep.subr.bf16.mxu0 0
        %1719 = vmatpush1.bf16.msra.mxu0 %v1627
        %1720 = vmatprep.subr.bf16.mxu0 0
        %1721 = vmatpush1.bf16.msra.mxu0 %v1624
        %1722 = vmatprep.subr.bf16.mxu0 0
        %1723 = vmatpush1.bf16.msra.mxu0 %v1621
        %1724 = vmatprep.subr.bf16.mxu0 0
        %1725 = vmatpush2.bf16.msra.mxu0 0
        %1726 = vmatprep.subr.bf16.mxu0 0
        %1727 = vmatpush2.bf16.msra.mxu0 0
        %1728 = vmatprep.subr.bf16.mxu0 0
        %1729 = vmatpush2.bf16.msra.mxu0 0
        %1730 = vmatprep.subr.bf16.mxu0 0
        %1731 = vmatpush2.bf16.msra.mxu0 0
        %1732 = vmatprep.subr.bf16.mxu0 0
        %1733 = vmatpush2.bf16.msra.mxu0 0
        %1734 = vmatprep.subr.bf16.mxu0 0
        %1735 = vmatpush2.bf16.msra.mxu0 0
        %1736 = vmatprep.subr.bf16.mxu0 0
        %1737 = vmatpush2.bf16.msra.mxu0 0
        %1738 = vmatprep.subr.bf16.mxu0 0
        %1739 = vmatpush2.bf16.msra.mxu0 0
        %1740 = vmatprep.mubr.bf16.mxu0 0
        %1741 = vmatmul.mubr.bf16.gmra.mxu0 %v1489
        %v1742 = vpop.f32.mrf.mxu0
        %v1743 = vadd.f32 %v1535, %v1742
        %v1744 = vpop.f32.mrf.mxu0
        %v1745 = vpop.f32.mrf.mxu0
        %v1746 = vpop.f32.mrf.mxu0
        %1747 = vdwg.mxu0
        %v1748 = vmul.f32 %v1702, 0.17677669
        %v1749 = vld [vmem:[%s6] sm:$0xff]
        %v1750 = vld [vmem:[%s6 + $0x8] sm:$0xff]
        %v1751 = vld [vmem:[%s6 + $0x10] sm:$0xff]
        %v1752 = vld [vmem:[%s6 + $0x18] sm:$0xff]
        %v1753 = vpack.c.bf16 %v1748, %v1748
        %v1754 = vmul.f32 %v1704, %v1749
        %v1755 = vmul.f32 %v1704, %v1750
        %v1756 = vmul.f32 %v1704, %v1751
        %v1757 = vmul.f32 %v1704, %v1752
        %v1758 = vpack.c.bf16 %v1755, %v1754
        %v1759 = vpack.c.bf16 %v1757, %v1756
        %v1760 = vmul.f32 %v1743, %v1749
        %v1761 = vmul.f32 %v1743, %v1750
        %v1762 = vmul.f32 %v1743, %v1751
        %v1763 = vmul.f32 %v1743, %v1752
        %v1764 = vpack.c.bf16 %v1761, %v1760
        %v1765 = vpack.c.bf16 %v1763, %v1762
        %v1766 = vld [vmem:[%s5] sm:$0xff]
        %v1767 = vld [vmem:[%s5 + $0x8] sm:$0xff]
        %v1768 = vld [vmem:[%s5 + $0x10] sm:$0xff]
        %v1769 = vld [vmem:[%s5 + $0x18] sm:$0xff]
        %1770 = vmatprep.subr.bf16.mxu0 0
        %1771 = vmatpush1.bf16.xpose.msra.mxu0 0
        %1772 = vmatprep.subr.bf16.mxu0 0
        %1773 = vmatpush1.bf16.xpose.msra.mxu0 0
        %1774 = vmatprep.subr.bf16.mxu0 0
        %1775 = vmatpush1.bf16.xpose.msra.mxu0 0
        %1776 = vmatprep.subr.bf16.mxu0 0
        %1777 = vmatpush1.bf16.xpose.msra.mxu0 0
        %1778 = vmatprep.subr.bf16.mxu0 0
        %1779 = vmatpush1.bf16.xpose.msra.mxu0 0
        %1780 = vmatprep.subr.bf16.mxu0 0
        %1781 = vmatpush1.bf16.xpose.msra.mxu0 0
        %1782 = vmatprep.subr.bf16.mxu0 0
        %1783 = vmatpush1.bf16.xpose.msra.mxu0 %v1759
        %1784 = vmatprep.subr.bf16.mxu0 0
        %1785 = vmatpush1.bf16.xpose.msra.mxu0 %v1758
        %1786 = vmatprep.subr.bf16.mxu0 0
        %1787 = vmatpush2.bf16.xpose.msra.mxu0 0
        %1788 = vmatprep.subr.bf16.mxu0 0
        %1789 = vmatpush2.bf16.xpose.msra.mxu0 0
        %1790 = vmatprep.subr.bf16.mxu0 0
        %1791 = vmatpush2.bf16.xpose.msra.mxu0 0
        %1792 = vmatprep.subr.bf16.mxu0 0
        %1793 = vmatpush2.bf16.xpose.msra.mxu0 0
        %1794 = vmatprep.subr.bf16.mxu0 0
        %1795 = vmatpush2.bf16.xpose.msra.mxu0 0
        %1796 = vmatprep.subr.bf16.mxu0 0
        %1797 = vmatpush2.bf16.xpose.msra.mxu0 0
        %1798 = vmatprep.subr.bf16.mxu0 0
        %1799 = vmatpush2.bf16.xpose.msra.mxu0 0
        %1800 = vmatprep.subr.bf16.mxu0 0
        %1801 = vmatpush2.bf16.xpose.msra.mxu0 0
        %1802 = vmatprep.mubr.bf16.mxu0 0
        %1803 = vmatmul.mubr.bf16.gmra.mxu0 %v1753
        %v1804 = vpop.f32.mrf.mxu0
        %v1805 = vadd.f32 %v1766, %v1804
        %v1806 = vpop.f32.mrf.mxu0
        %v1807 = vpop.f32.mrf.mxu0
        %v1808 = vadd.f32 %v1767, %v1807
        %v1809 = vpop.f32.mrf.mxu0
        %1810 = vmatprep.mubr.bf16.mxu0 0
        %1811 = vmatmul.mubr.bf16.gmra.mxu0 %v1753
        %v1812 = vpop.f32.mrf.mxu0
        %v1813 = vadd.f32 %v1768, %v1812
        %v1814 = vpop.f32.mrf.mxu0
        %v1815 = vpop.f32.mrf.mxu0
        %v1816 = vadd.f32 %v1769, %v1815
        %v1817 = vpop.f32.mrf.mxu0
        %1818 = vdwg.mxu0
        %vm1819 = vcmask 261120
        %v1820 = vsel %vm1819, %v1805, -inf
        %1821 = vmax.xlane.f32.xlu0 %v1820
        %v1822 = vpop.xlane.xlu0 %1821
        %v1823 = vsel %vm1819, %v1808, -inf
        %1824 = vmax.xlane.f32.xlu0 %v1823
        %v1825 = vpop.xlane.xlu0 %1824
        %v1826 = vsel %vm1819, %v1813, -inf
        %1827 = vmax.xlane.f32.xlu0 %v1826
        %v1828 = vpop.xlane.xlu0 %1827
        %v1829 = vsel %vm1819, %v1816, -inf
        %1830 = vmax.xlane.f32.xlu0 %v1829
        %v1831 = vpop.xlane.xlu0 %1830
        %v1832 = vsub.f32 %v1805, %v1822
        %v1833 = vsub.f32 %v1808, %v1825
        %v1834 = vsub.f32 %v1813, %v1828
        %v1835 = vsub.f32 %v1816, %v1831
        %v1836 = vmul.f32 %v1832, 1.442695
        %v1837 = vpow.pop %v1836
        %v1838 = vmul.f32 %v1833, 1.442695
        %v1839 = vpow.pop %v1838
        %v1840 = vmul.f32 %v1834, 1.442695
        %v1841 = vpow.pop %v1840
        %v1842 = vmul.f32 %v1835, 1.442695
        %v1843 = vpow.pop %v1842
        %v1844 = vsel %vm1819, %v1837, 0.0
        %1845 = vadd.xlane.f32.xlu0 %v1844
        %v1846 = vpop.xlane.xlu0 %1845
        %v1847 = vsel %vm1819, %v1839, 0.0
        %1848 = vadd.xlane.f32.xlu0 %v1847
        %v1849 = vpop.xlane.xlu0 %1848
        %v1850 = vsel %vm1819, %v1841, 0.0
        %1851 = vadd.xlane.f32.xlu0 %v1850
        %v1852 = vpop.xlane.xlu0 %1851
        %v1853 = vsel %vm1819, %v1843, 0.0
        %1854 = vadd.xlane.f32.xlu0 %v1853
        %v1855 = vpop.xlane.xlu0 %1854
        %v1856 = vrcp.pop %v1846
        %v1857 = vrcp.pop %v1849
        %v1858 = vrcp.pop %v1852
        %v1859 = vrcp.pop %v1855
        %v1860 = vmul.f32 %v1837, %v1856
        %v1861 = vmul.f32 %v1839, %v1857
        %v1862 = vmul.f32 %v1841, %v1858
        %v1863 = vmul.f32 %v1843, %v1859
        %v1864 = vpack.c.bf16 %v1861, %v1860
        %v1865 = vpack.c.bf16 %v1863, %v1862
        %v1867 = vsel %vm1819, %v1864, 0
        %v1870 = vsel %vm1819, %v1865, 0
        %1872 = vmatprep.subr.bf16.mxu0 0
        %1873 = vmatpush1.bf16.msra.mxu0 0
        %1874 = vmatprep.subr.bf16.mxu0 0
        %1875 = vmatpush1.bf16.msra.mxu0 0
        %1876 = vmatprep.subr.bf16.mxu0 0
        %1877 = vmatpush1.bf16.msra.mxu0 0
        %1878 = vmatprep.subr.bf16.mxu0 0
        %1879 = vmatpush1.bf16.msra.mxu0 0
        %1880 = vmatprep.subr.bf16.mxu0 0
        %1881 = vmatpush1.bf16.msra.mxu0 0
        %1882 = vmatprep.subr.bf16.mxu0 0
        %1883 = vmatpush1.bf16.msra.mxu0 0
        %1884 = vmatprep.subr.bf16.mxu0 0
        %1885 = vmatpush1.bf16.msra.mxu0 %v1765
        %1886 = vmatprep.subr.bf16.mxu0 0
        %1887 = vmatpush1.bf16.msra.mxu0 %v1764
        %1888 = vmatprep.subr.bf16.mxu0 0
        %1889 = vmatpush2.bf16.msra.mxu0 0
        %1890 = vmatprep.subr.bf16.mxu0 0
        %1891 = vmatpush2.bf16.msra.mxu0 0
        %1892 = vmatprep.subr.bf16.mxu0 0
        %1893 = vmatpush2.bf16.msra.mxu0 0
        %1894 = vmatprep.subr.bf16.mxu0 0
        %1895 = vmatpush2.bf16.msra.mxu0 0
        %1896 = vmatprep.subr.bf16.mxu0 0
        %1897 = vmatpush2.bf16.msra.mxu0 0
        %1898 = vmatprep.subr.bf16.mxu0 0
        %1899 = vmatpush2.bf16.msra.mxu0 0
        %1900 = vmatprep.subr.bf16.mxu0 0
        %1901 = vmatpush2.bf16.msra.mxu0 0
        %1902 = vmatprep.subr.bf16.mxu0 0
        %1903 = vmatpush2.bf16.msra.mxu0 0
        %1904 = vmatprep.mubr.bf16.mxu0 0
        %1905 = vmatmul.mubr.bf16.gmra.mxu0 %v1867
        %v1906 = vpop.f32.mrf.mxu0
        %v1907 = vadd.f32 0.0, %v1906
        %v1908 = vpop.f32.mrf.mxu0
        %v1909 = vpop.f32.mrf.mxu0
        %v1910 = vadd.f32 0.0, %v1909
        %v1911 = vpop.f32.mrf.mxu0
        %1912 = vmatprep.mubr.bf16.mxu0 0
        %1913 = vmatmul.mubr.bf16.gmra.mxu0 %v1870
        %v1914 = vpop.f32.mrf.mxu0
        %v1915 = vadd.f32 0.0, %v1914
        %v1916 = vpop.f32.mrf.mxu0
        %v1917 = vpop.f32.mrf.mxu0
        %v1918 = vadd.f32 0.0, %v1917
        %v1919 = vpop.f32.mrf.mxu0
        %1920 = vdwg.mxu0
        %v1921 = vadd.f32 %v1907, %v1910
        %v1922 = vadd.f32 %v1921, %v1915
        %v1923 = vadd.f32 %v1922, %v1918
        %v1924 = vpack.c.bf16 %v1923, %v1923
        %v1925 = vld [vmem:[%s891] sm:$0xf]
        %v1926 = vld [vmem:[%s891 + $0x4] sm:$0xf]
        %v1927 = vld [vmem:[%s891 + $0x8] sm:$0xf]
        %v1928 = vld [vmem:[%s891 + $0xc] sm:$0xf]
        %v1929 = vld [vmem:[%s891 + $0x10] sm:$0xf]
        %v1930 = vld [vmem:[%s891 + $0x14] sm:$0xf]
        %v1931 = vld [vmem:[%s891 + $0x18] sm:$0xf]
        %v1932 = vld [vmem:[%s891 + $0x1c] sm:$0xf]
        %v1933 = vld [vmem:[%s891 + $0x20] sm:$0xf]
        %v1934 = vld [vmem:[%s891 + $0x24] sm:$0xf]
        %v1935 = vld [vmem:[%s891 + $0x28] sm:$0xf]
        %v1936 = vld [vmem:[%s891 + $0x2c] sm:$0xf]
        %v1937 = vld [vmem:[%s891 + $0x30] sm:$0xf]
        %v1938 = vld [vmem:[%s891 + $0x34] sm:$0xf]
        %v1939 = vld [vmem:[%s891 + $0x38] sm:$0xf]
        %v1940 = vld [vmem:[%s891 + $0x3c] sm:$0xf]
        %v1941 = vld [vmem:[%s894] sm:$0x1]
        %v1943 = vlaneseq
        %v1944 = vshrl.u32 %v1943, 7
        %v1945 = vsub.s32 0, %v1944
        %v1946 = vrot.slane %v1941, %v1945
        %v1964 = vunpack.c.l.b16 %v1925
        %v1965 = vunpack.c.l.b16 %v1926
        %v1966 = vunpack.c.l.b16 %v1927
        %v1967 = vunpack.c.l.b16 %v1928
        %v1968 = vunpack.c.l.b16 %v1929
        %v1969 = vunpack.c.l.b16 %v1930
        %v1970 = vunpack.c.l.b16 %v1931
        %v1971 = vunpack.c.l.b16 %v1932
        %v1972 = vunpack.c.l.b16 %v1933
        %v1973 = vunpack.c.l.b16 %v1934
        %v1974 = vunpack.c.l.b16 %v1935
        %v1975 = vunpack.c.l.b16 %v1936
        %v1976 = vunpack.c.l.b16 %v1937
        %v1977 = vunpack.c.l.b16 %v1938
        %v1978 = vunpack.c.l.b16 %v1939
        %v1979 = vunpack.c.l.b16 %v1940
        %v1980 = vpack.c.b16 %v1965, %v1964
        %v1981 = vpack.c.b16 %v1967, %v1966
        %v1982 = vpack.c.b16 %v1969, %v1968
        %v1983 = vpack.c.b16 %v1971, %v1970
        %v1984 = vpack.c.b16 %v1973, %v1972
        %v1985 = vpack.c.b16 %v1975, %v1974
        %v1986 = vpack.c.b16 %v1977, %v1976
        %v1987 = vpack.c.b16 %v1979, %v1978
        %1996 = vmatprep.subr.bf16.mxu0 0
        %1997 = vmatpush1.bf16.msra.mxu0 %v1987
        %1998 = vmatprep.subr.bf16.mxu0 0
        %1999 = vmatpush1.bf16.msra.mxu0 %v1986
        %2000 = vmatprep.subr.bf16.mxu0 0
        %2001 = vmatpush1.bf16.msra.mxu0 %v1985
        %2002 = vmatprep.subr.bf16.mxu0 0
        %2003 = vmatpush1.bf16.msra.mxu0 %v1984
        %2004 = vmatprep.subr.bf16.mxu0 0
        %2005 = vmatpush1.bf16.msra.mxu0 %v1983
        %2006 = vmatprep.subr.bf16.mxu0 0
        %2007 = vmatpush1.bf16.msra.mxu0 %v1982
        %2008 = vmatprep.subr.bf16.mxu0 0
        %2009 = vmatpush1.bf16.msra.mxu0 %v1981
        %2010 = vmatprep.subr.bf16.mxu0 0
        %2011 = vmatpush1.bf16.msra.mxu0 %v1980
        %2012 = vmatprep.subr.bf16.mxu0 0
        %2013 = vmatpush2.bf16.msra.mxu0 0
        %2014 = vmatprep.subr.bf16.mxu0 0
        %2015 = vmatpush2.bf16.msra.mxu0 0
        %2016 = vmatprep.subr.bf16.mxu0 0
        %2017 = vmatpush2.bf16.msra.mxu0 0
        %2018 = vmatprep.subr.bf16.mxu0 0
        %2019 = vmatpush2.bf16.msra.mxu0 0
        %2020 = vmatprep.subr.bf16.mxu0 0
        %2021 = vmatpush2.bf16.msra.mxu0 0
        %2022 = vmatprep.subr.bf16.mxu0 0
        %2023 = vmatpush2.bf16.msra.mxu0 0
        %2024 = vmatprep.subr.bf16.mxu0 0
        %2025 = vmatpush2.bf16.msra.mxu0 0
        %2026 = vmatprep.subr.bf16.mxu0 0
        %2027 = vmatpush2.bf16.msra.mxu0 0
        %2028 = vmatprep.mubr.bf16.mxu0 0
        %2029 = vmatmul.mubr.bf16.gmra.mxu0 %v1924
        %v2030 = vpop.f32.mrf.mxu0
        %v2031 = vadd.f32 %v1946, %v2030
        %v2032 = vpop.f32.mrf.mxu0
        %v2033 = vpop.f32.mrf.mxu0
        %v2034 = vpop.f32.mrf.mxu0
        %2035 = vdwg.mxu0
        %v2036 = vadd.f32 %v1460, %v2031
        %v2037 = vld [vmem:[%s897] sm:$0x1]
        %v2038 = vld [vmem:[%s900] sm:$0x1]
        %2039 = vadd.xlane.f32.xlu0 %v2036
        %v2040 = vpop.xlane.xlu0 %2039
        %v2041 = vmul.f32 %v2040, %v1465
        %v2042 = vsub.f32 %v2036, %v2041
        %v2043 = vmul.f32 %v2042, %v2042
        %2044 = vadd.xlane.f32.xlu0 %v2043
        %v2045 = vpop.xlane.xlu0 %2044
        %v2046 = vmul.f32 %v2045, %v1465
        %v2047 = vadd.f32 %v2046, 1e-12
        %v2048 = vrsqrt.pop %v2047
        %v2049 = vmul.f32 %v2042, %v2048
        %v2051 = vlaneseq
        %v2052 = vshrl.u32 %v2051, 7
        %v2053 = vsub.s32 0, %v2052
        %v2054 = vrot.slane %v2037, %v2053
        %v2056 = vmul.f32 %v2049, %v2054
        %v2058 = vlaneseq
        %v2059 = vshrl.u32 %v2058, 7
        %v2060 = vsub.s32 0, %v2059
        %v2061 = vrot.slane %v2038, %v2060
        %v2063 = vadd.f32 %v2056, %v2061
        %v2064 = vpack.c.bf16 %v2063, %v2063
        %v2065 = vld [vmem:[%s905] sm:$0xff]
        %v2066 = vld [vmem:[%s905 + $0x8] sm:$0xff]
        %v2067 = vld [vmem:[%s905 + $0x10] sm:$0xff]
        %v2068 = vld [vmem:[%s905 + $0x18] sm:$0xff]
        %v2069 = vld [vmem:[%s905 + $0x20] sm:$0xff]
        %v2070 = vld [vmem:[%s905 + $0x28] sm:$0xff]
        %v2071 = vld [vmem:[%s905 + $0x30] sm:$0xff]
        %v2072 = vld [vmem:[%s905 + $0x38] sm:$0xff]
        %v2073 = vld [vmem:[%s905 + $0x40] sm:$0xff]
        %v2074 = vld [vmem:[%s905 + $0x48] sm:$0xff]
        %v2075 = vld [vmem:[%s905 + $0x50] sm:$0xff]
        %v2076 = vld [vmem:[%s905 + $0x58] sm:$0xff]
        %v2077 = vld [vmem:[%s905 + $0x60] sm:$0xff]
        %v2078 = vld [vmem:[%s905 + $0x68] sm:$0xff]
        %v2079 = vld [vmem:[%s905 + $0x70] sm:$0xff]
        %v2080 = vld [vmem:[%s905 + $0x78] sm:$0xff]
        %v2081 = vld [vmem:[%s909] sm:$0x3]
        %v2083 = vlaneseq
        %v2084 = vshrl.u32 %v2083, 7
        %v2085 = vsub.s32 0, %v2084
        %v2086 = vrot.slane %v2081, %v2085
        %v2087 = vlaneseq
        %v2088 = vshrl.u32 %v2087, 7
        %v2089 = vsub.s32 1, %v2088
        %v2090 = vrot.slane %v2081, %v2089
        %v2109 = vunpack.c.l.b16 %v2065
        %v2110 = vunpack.c.h.b16 %v2065
        %v2111 = vunpack.c.l.b16 %v2066
        %v2112 = vunpack.c.h.b16 %v2066
        %v2113 = vunpack.c.l.b16 %v2067
        %v2114 = vunpack.c.h.b16 %v2067
        %v2115 = vunpack.c.l.b16 %v2068
        %v2116 = vunpack.c.h.b16 %v2068
        %v2117 = vunpack.c.l.b16 %v2069
        %v2118 = vunpack.c.h.b16 %v2069
        %v2119 = vunpack.c.l.b16 %v2070
        %v2120 = vunpack.c.h.b16 %v2070
        %v2121 = vunpack.c.l.b16 %v2071
        %v2122 = vunpack.c.h.b16 %v2071
        %v2123 = vunpack.c.l.b16 %v2072
        %v2124 = vunpack.c.h.b16 %v2072
        %v2125 = vunpack.c.l.b16 %v2073
        %v2126 = vunpack.c.h.b16 %v2073
        %v2127 = vunpack.c.l.b16 %v2074
        %v2128 = vunpack.c.h.b16 %v2074
        %v2129 = vunpack.c.l.b16 %v2075
        %v2130 = vunpack.c.h.b16 %v2075
        %v2131 = vunpack.c.l.b16 %v2076
        %v2132 = vunpack.c.h.b16 %v2076
        %v2133 = vunpack.c.l.b16 %v2077
        %v2134 = vunpack.c.h.b16 %v2077
        %v2135 = vunpack.c.l.b16 %v2078
        %v2136 = vunpack.c.h.b16 %v2078
        %v2137 = vunpack.c.l.b16 %v2079
        %v2138 = vunpack.c.h.b16 %v2079
        %v2139 = vunpack.c.l.b16 %v2080
        %v2140 = vunpack.c.h.b16 %v2080
        %v2141 = vpack.c.b16 %v2111, %v2109
        %v2142 = vpack.c.b16 %v2112, %v2110
        %v2143 = vpack.c.b16 %v2115, %v2113
        %v2144 = vpack.c.b16 %v2116, %v2114
        %v2145 = vpack.c.b16 %v2119, %v2117
        %v2146 = vpack.c.b16 %v2120, %v2118
        %v2147 = vpack.c.b16 %v2123, %v2121
        %v2148 = vpack.c.b16 %v2124, %v2122
        %v2149 = vpack.c.b16 %v2127, %v2125
        %v2150 = vpack.c.b16 %v2128, %v2126
        %v2151 = vpack.c.b16 %v2131, %v2129
        %v2152 = vpack.c.b16 %v2132, %v2130
        %v2153 = vpack.c.b16 %v2135, %v2133
        %v2154 = vpack.c.b16 %v2136, %v2134
        %v2155 = vpack.c.b16 %v2139, %v2137
        %v2156 = vpack.c.b16 %v2140, %v2138
        %2173 = vmatprep.subr.bf16.mxu0 %v2156
        %2174 = vmatpush1.bf16.msra.mxu0 %v2155
        %2175 = vmatprep.subr.bf16.mxu0 %v2154
        %2176 = vmatpush1.bf16.msra.mxu0 %v2153
        %2177 = vmatprep.subr.bf16.mxu0 %v2152
        %2178 = vmatpush1.bf16.msra.mxu0 %v2151
        %2179 = vmatprep.subr.bf16.mxu0 %v2150
        %2180 = vmatpush1.bf16.msra.mxu0 %v2149
        %2181 = vmatprep.subr.bf16.mxu0 %v2148
        %2182 = vmatpush1.bf16.msra.mxu0 %v2147
        %2183 = vmatprep.subr.bf16.mxu0 %v2146
        %2184 = vmatpush1.bf16.msra.mxu0 %v2145
        %2185 = vmatprep.subr.bf16.mxu0 %v2144
        %2186 = vmatpush1.bf16.msra.mxu0 %v2143
        %2187 = vmatprep.subr.bf16.mxu0 %v2142
        %2188 = vmatpush1.bf16.msra.mxu0 %v2141
        %2189 = vmatprep.subr.bf16.mxu0 0
        %2190 = vmatpush2.bf16.msra.mxu0 0
        %2191 = vmatprep.subr.bf16.mxu0 0
        %2192 = vmatpush2.bf16.msra.mxu0 0
        %2193 = vmatprep.subr.bf16.mxu0 0
        %2194 = vmatpush2.bf16.msra.mxu0 0
        %2195 = vmatprep.subr.bf16.mxu0 0
        %2196 = vmatpush2.bf16.msra.mxu0 0
        %2197 = vmatprep.subr.bf16.mxu0 0
        %2198 = vmatpush2.bf16.msra.mxu0 0
        %2199 = vmatprep.subr.bf16.mxu0 0
        %2200 = vmatpush2.bf16.msra.mxu0 0
        %2201 = vmatprep.subr.bf16.mxu0 0
        %2202 = vmatpush2.bf16.msra.mxu0 0
        %2203 = vmatprep.subr.bf16.mxu0 0
        %2204 = vmatpush2.bf16.msra.mxu0 0
        %2205 = vmatprep.mubr.bf16.mxu0 0
        %2206 = vmatmul.mubr.bf16.gmra.mxu0 %v2064
        %v2207 = vpop.f32.mrf.mxu0
        %v2208 = vadd.f32 %v2086, %v2207
        %v2209 = vpop.f32.mrf.mxu0
        %v2210 = vadd.f32 %v2090, %v2209
        %v2211 = vpop.f32.mrf.mxu0
        %v2212 = vpop.f32.mrf.mxu0
        %2213 = vdwg.mxu0
        %v2214 = vmul.f32 %v2208, 0.5
        %v2215 = vmul.f32 %v2210, 0.5
        %v2216 = vmul.f32 %v2208, 0.70710677
        %v2217 = vmul.f32 %v2210, 0.70710677
        %v2218 = verf.f32.pop %v2216
        %v2219 = verf.f32.pop %v2217
        %v2220 = vadd.f32 %v2218, 1.0
        %v2221 = vadd.f32 %v2219, 1.0
        %v2222 = vmul.f32 %v2214, %v2220
        %v2223 = vmul.f32 %v2215, %v2221
        %v2224 = vpack.c.bf16 %v2222, %v2222
        %v2225 = vpack.c.bf16 %v2223, %v2223
        %v2226 = vld [vmem:[%s914] sm:$0xf]
        %v2227 = vld [vmem:[%s914 + $0x4] sm:$0xf]
        %v2228 = vld [vmem:[%s914 + $0x8] sm:$0xf]
        %v2229 = vld [vmem:[%s914 + $0xc] sm:$0xf]
        %v2230 = vld [vmem:[%s914 + $0x10] sm:$0xf]
        %v2231 = vld [vmem:[%s914 + $0x14] sm:$0xf]
        %v2232 = vld [vmem:[%s914 + $0x18] sm:$0xf]
        %v2233 = vld [vmem:[%s914 + $0x1c] sm:$0xf]
        %v2234 = vld [vmem:[%s914 + $0x20] sm:$0xf]
        %v2235 = vld [vmem:[%s914 + $0x24] sm:$0xf]
        %v2236 = vld [vmem:[%s914 + $0x28] sm:$0xf]
        %v2237 = vld [vmem:[%s914 + $0x2c] sm:$0xf]
        %v2238 = vld [vmem:[%s914 + $0x30] sm:$0xf]
        %v2239 = vld [vmem:[%s914 + $0x34] sm:$0xf]
        %v2240 = vld [vmem:[%s914 + $0x38] sm:$0xf]
        %v2241 = vld [vmem:[%s914 + $0x3c] sm:$0xf]
        %v2242 = vld [vmem:[%s914 + $0x40] sm:$0xf]
        %v2243 = vld [vmem:[%s914 + $0x44] sm:$0xf]
        %v2244 = vld [vmem:[%s914 + $0x48] sm:$0xf]
        %v2245 = vld [vmem:[%s914 + $0x4c] sm:$0xf]
        %v2246 = vld [vmem:[%s914 + $0x50] sm:$0xf]
        %v2247 = vld [vmem:[%s914 + $0x54] sm:$0xf]
        %v2248 = vld [vmem:[%s914 + $0x58] sm:$0xf]
        %v2249 = vld [vmem:[%s914 + $0x5c] sm:$0xf]
        %v2250 = vld [vmem:[%s914 + $0x60] sm:$0xf]
        %v2251 = vld [vmem:[%s914 + $0x64] sm:$0xf]
        %v2252 = vld [vmem:[%s914 + $0x68] sm:$0xf]
        %v2253 = vld [vmem:[%s914 + $0x6c] sm:$0xf]
        %v2254 = vld [vmem:[%s914 + $0x70] sm:$0xf]
        %v2255 = vld [vmem:[%s914 + $0x74] sm:$0xf]
        %v2256 = vld [vmem:[%s914 + $0x78] sm:$0xf]
        %v2257 = vld [vmem:[%s914 + $0x7c] sm:$0xf]
        %v2258 = vld [vmem:[%s917] sm:$0x1]
        %v2260 = vlaneseq
        %v2261 = vshrl.u32 %v2260, 7
        %v2262 = vsub.s32 0, %v2261
        %v2263 = vrot.slane %v2258, %v2262
        %v2297 = vunpack.c.l.b16 %v2226
        %v2298 = vunpack.c.l.b16 %v2227
        %v2299 = vunpack.c.l.b16 %v2228
        %v2300 = vunpack.c.l.b16 %v2229
        %v2301 = vunpack.c.l.b16 %v2230
        %v2302 = vunpack.c.l.b16 %v2231
        %v2303 = vunpack.c.l.b16 %v2232
        %v2304 = vunpack.c.l.b16 %v2233
        %v2305 = vunpack.c.l.b16 %v2234
        %v2306 = vunpack.c.l.b16 %v2235
        %v2307 = vunpack.c.l.b16 %v2236
        %v2308 = vunpack.c.l.b16 %v2237
        %v2309 = vunpack.c.l.b16 %v2238
        %v2310 = vunpack.c.l.b16 %v2239
        %v2311 = vunpack.c.l.b16 %v2240
        %v2312 = vunpack.c.l.b16 %v2241
        %v2313 = vunpack.c.l.b16 %v2242
        %v2314 = vunpack.c.l.b16 %v2243
        %v2315 = vunpack.c.l.b16 %v2244
        %v2316 = vunpack.c.l.b16 %v2245
        %v2317 = vunpack.c.l.b16 %v2246
        %v2318 = vunpack.c.l.b16 %v2247
        %v2319 = vunpack.c.l.b16 %v2248
        %v2320 = vunpack.c.l.b16 %v2249
        %v2321 = vunpack.c.l.b16 %v2250
        %v2322 = vunpack.c.l.b16 %v2251
        %v2323 = vunpack.c.l.b16 %v2252
        %v2324 = vunpack.c.l.b16 %v2253
        %v2325 = vunpack.c.l.b16 %v2254
        %v2326 = vunpack.c.l.b16 %v2255
        %v2327 = vunpack.c.l.b16 %v2256
        %v2328 = vunpack.c.l.b16 %v2257
        %v2329 = vpack.c.b16 %v2298, %v2297
        %v2330 = vpack.c.b16 %v2300, %v2299
        %v2331 = vpack.c.b16 %v2302, %v2301
        %v2332 = vpack.c.b16 %v2304, %v2303
        %v2333 = vpack.c.b16 %v2306, %v2305
        %v2334 = vpack.c.b16 %v2308, %v2307
        %v2335 = vpack.c.b16 %v2310, %v2309
        %v2336 = vpack.c.b16 %v2312, %v2311
        %v2337 = vpack.c.b16 %v2314, %v2313
        %v2338 = vpack.c.b16 %v2316, %v2315
        %v2339 = vpack.c.b16 %v2318, %v2317
        %v2340 = vpack.c.b16 %v2320, %v2319
        %v2341 = vpack.c.b16 %v2322, %v2321
        %v2342 = vpack.c.b16 %v2324, %v2323
        %v2343 = vpack.c.b16 %v2326, %v2325
        %v2344 = vpack.c.b16 %v2328, %v2327
        %2361 = vmatprep.subr.bf16.mxu0 0
        %2362 = vmatpush1.bf16.msra.mxu0 %v2336
        %2363 = vmatprep.subr.bf16.mxu0 0
        %2364 = vmatpush1.bf16.msra.mxu0 %v2335
        %2365 = vmatprep.subr.bf16.mxu0 0
        %2366 = vmatpush1.bf16.msra.mxu0 %v2334
        %2367 = vmatprep.subr.bf16.mxu0 0
        %2368 = vmatpush1.bf16.msra.mxu0 %v2333
        %2369 = vmatprep.subr.bf16.mxu0 0
        %2370 = vmatpush1.bf16.msra.mxu0 %v2332
        %2371 = vmatprep.subr.bf16.mxu0 0
        %2372 = vmatpush1.bf16.msra.mxu0 %v2331
        %2373 = vmatprep.subr.bf16.mxu0 0
        %2374 = vmatpush1.bf16.msra.mxu0 %v2330
        %2375 = vmatprep.subr.bf16.mxu0 0
        %2376 = vmatpush1.bf16.msra.mxu0 %v2329
        %2377 = vmatprep.subr.bf16.mxu0 0
        %2378 = vmatpush2.bf16.msra.mxu0 %v2344
        %2379 = vmatprep.subr.bf16.mxu0 0
        %2380 = vmatpush2.bf16.msra.mxu0 %v2343
        %2381 = vmatprep.subr.bf16.mxu0 0
        %2382 = vmatpush2.bf16.msra.mxu0 %v2342
        %2383 = vmatprep.subr.bf16.mxu0 0
        %2384 = vmatpush2.bf16.msra.mxu0 %v2341
        %2385 = vmatprep.subr.bf16.mxu0 0
        %2386 = vmatpush2.bf16.msra.mxu0 %v2340
        %2387 = vmatprep.subr.bf16.mxu0 0
        %2388 = vmatpush2.bf16.msra.mxu0 %v2339
        %2389 = vmatprep.subr.bf16.mxu0 0
        %2390 = vmatpush2.bf16.msra.mxu0 %v2338
        %2391 = vmatprep.subr.bf16.mxu0 0
        %2392 = vmatpush2.bf16.msra.mxu0 %v2337
        %2393 = vmatprep.mubr.bf16.mxu0 %v2225
        %2394 = vmatmul.mubr.bf16.gmra.mxu0 %v2224
        %v2395 = vpop.f32.mrf.mxu0
        %v2396 = vadd.f32 %v2263, %v2395
        %v2397 = vpop.f32.mrf.mxu0
        %v2398 = vpop.f32.mrf.mxu0
        %v2399 = vpop.f32.mrf.mxu0
        %2400 = vdwg.mxu0
        %v2401 = vadd.f32 %v2036, %v2396
        %2402 = vst [vmem:[#allocation2] sm:$0xff] %v2401
        %p2403 = scmp.eq.s32.totalorder %s42, 1
        // Predicated region
        $region117: #{vit_forward.1} parent=111 // pred_check
          %p2404 = pneg %p2403
        $region118: #{vit_forward.1} parent=111 // pred_check_branch
          %2406 = sbr.rel (%p2404) target = $region120
        $region119: #{vit_forward.1} parent=111 // pred_region
          %v2407 = vld [vmem:[%s19] sm:$0x1]
          %v2408 = vld [vmem:[%s20] sm:$0x1]
          %vm2409 = vcmask 1040384
          %v2410 = vsel %vm2409, %v2401, 0.0
          %2411 = vadd.xlane.f32.xlu0 %v2410
          %v2412 = vpop.xlane.xlu0 %2411
          %v2413 = vmul.f32 %v2412, %v1465
          %v2414 = vsub.f32 %v2401, %v2413
          %v2415 = vmul.f32 %v2414, %v2414
          %v2416 = vsel %vm2409, %v2415, 0.0
          %2417 = vadd.xlane.f32.xlu0 %v2416
          %v2418 = vpop.xlane.xlu0 %2417
          %v2419 = vmul.f32 %v2418, %v1465
          %v2420 = vadd.f32 %v2419, 1e-12
          %v2421 = vrsqrt.pop %v2420
          %v2422 = vmul.f32 %v2414, %v2421
          %v2423 = vmul.f32 %v2422, %v2407
          %v2424 = vadd.f32 %v2423, %v2408
          %v2425 = vpack.c.bf16 %v2424, %v2424
          %v2426 = vld [vmem:[%s21] sm:$0xf]
          %v2427 = vld [vmem:[%s21 + $0x4] sm:$0xf]
          %v2428 = vld [vmem:[%s21 + $0x8] sm:$0xf]
          %v2429 = vld [vmem:[%s21 + $0xc] sm:$0xf]
          %v2430 = vld [vmem:[%s21 + $0x10] sm:$0xf]
          %v2431 = vld [vmem:[%s21 + $0x14] sm:$0xf]
          %v2432 = vld [vmem:[%s21 + $0x18] sm:$0xf]
          %v2433 = vld [vmem:[%s21 + $0x1c] sm:$0xf]
          %v2434 = vld [vmem:[%s21 + $0x20] sm:$0xf]
          %v2435 = vld [vmem:[%s21 + $0x24] sm:$0xf]
          %v2436 = vld [vmem:[%s21 + $0x28] sm:$0xf]
          %v2437 = vld [vmem:[%s21 + $0x2c] sm:$0xf]
          %v2438 = vld [vmem:[%s21 + $0x30] sm:$0xf]
          %v2439 = vld [vmem:[%s21 + $0x34] sm:$0xf]
          %v2440 = vld [vmem:[%s21 + $0x38] sm:$0xf]
          %v2441 = vld [vmem:[%s21 + $0x3c] sm:$0xf]
          %v2442 = vld [vmem:[%s22] sm:$0x1]
          %v2459 = vunpack.c.l.b16 %v2426
          %v2460 = vunpack.c.l.b16 %v2427
          %v2461 = vunpack.c.l.b16 %v2428
          %v2462 = vunpack.c.l.b16 %v2429
          %v2463 = vunpack.c.l.b16 %v2430
          %v2464 = vunpack.c.l.b16 %v2431
          %v2465 = vunpack.c.l.b16 %v2432
          %v2466 = vunpack.c.l.b16 %v2433
          %v2467 = vunpack.c.l.b16 %v2434
          %v2468 = vunpack.c.l.b16 %v2435
          %v2469 = vunpack.c.l.b16 %v2436
          %v2470 = vunpack.c.l.b16 %v2437
          %v2471 = vunpack.c.l.b16 %v2438
          %v2472 = vunpack.c.l.b16 %v2439
          %v2473 = vunpack.c.l.b16 %v2440
          %v2474 = vunpack.c.l.b16 %v2441
          %v2475 = vpack.c.b16 %v2460, %v2459
          %v2476 = vpack.c.b16 %v2462, %v2461
          %v2477 = vpack.c.b16 %v2464, %v2463
          %v2478 = vpack.c.b16 %v2466, %v2465
          %v2479 = vpack.c.b16 %v2468, %v2467
          %v2480 = vpack.c.b16 %v2470, %v2469
          %v2481 = vpack.c.b16 %v2472, %v2471
          %v2482 = vpack.c.b16 %v2474, %v2473
          %2491 = vmatprep.subr.bf16.mxu0 0
          %2492 = vmatpush1.bf16.msra.mxu0 %v2482
          %2493 = vmatprep.subr.bf16.mxu0 0
          %2494 = vmatpush1.bf16.msra.mxu0 %v2481
          %2495 = vmatprep.subr.bf16.mxu0 0
          %2496 = vmatpush1.bf16.msra.mxu0 %v2480
          %2497 = vmatprep.subr.bf16.mxu0 0
          %2498 = vmatpush1.bf16.msra.mxu0 %v2479
          %2499 = vmatprep.subr.bf16.mxu0 0
          %2500 = vmatpush1.bf16.msra.mxu0 %v2478
          %2501 = vmatprep.subr.bf16.mxu0 0
          %2502 = vmatpush1.bf16.msra.mxu0 %v2477
          %2503 = vmatprep.subr.bf16.mxu0 0
          %2504 = vmatpush1.bf16.msra.mxu0 %v2476
          %2505 = vmatprep.subr.bf16.mxu0 0
          %2506 = vmatpush1.bf16.msra.mxu0 %v2475
          %2507 = vmatprep.subr.bf16.mxu0 0
          %2508 = vmatpush2.bf16.msra.mxu0 0
          %2509 = vmatprep.subr.bf16.mxu0 0
          %2510 = vmatpush2.bf16.msra.mxu0 0
          %2511 = vmatprep.subr.bf16.mxu0 0
          %2512 = vmatpush2.bf16.msra.mxu0 0
          %2513 = vmatprep.subr.bf16.mxu0 0
          %2514 = vmatpush2.bf16.msra.mxu0 0
          %2515 = vmatprep.subr.bf16.mxu0 0
          %2516 = vmatpush2.bf16.msra.mxu0 0
          %2517 = vmatprep.subr.bf16.mxu0 0
          %2518 = vmatpush2.bf16.msra.mxu0 0
          %2519 = vmatprep.subr.bf16.mxu0 0
          %2520 = vmatpush2.bf16.msra.mxu0 0
          %2521 = vmatprep.subr.bf16.mxu0 0
          %2522 = vmatpush2.bf16.msra.mxu0 0
          %2523 = vmatprep.mubr.bf16.mxu0 0
          %2524 = vmatmul.mubr.bf16.gmra.mxu0 %v2425
          %v2525 = vpop.f32.mrf.mxu0
          %v2526 = vadd.f32 %v2442, %v2525
          %v2527 = vpop.f32.mrf.mxu0
          %v2528 = vpop.f32.mrf.mxu0
          %v2529 = vpop.f32.mrf.mxu0
          %2530 = vdwg.mxu0
          %2531 = vst [vmem:[%s866] sm:$0x1] %v2526
        $region120: #{vit_forward.1} parent=111 // pred_fallthru
          _
        %s2532 = sand.u32 %s605, 1
        %s2533 = scalar_lea.sflag [#allocation4], %s2532
        %s2534 = sand.u32 %s605, 1
        %s2535 = scalar_lea.vmem [#allocation3], %s2534
        // Predicated region
        $region121: #{vit_forward.1} parent=111 // pred_check
          %p2536 = pneg %p615
        $region122: #{vit_forward.1} parent=111 // pred_check_branch
          %2538 = sbr.rel (%p2536) target = $region124
        $region123: #{vit_forward.1} parent=111 // pred_region
          %s2540 = ssub.s32 16, 16
          %2541 = vsyncadd %s2533, %s2540
          %s2542 = smul.addr %s41, 16
          %s2543 = scalar_lea.hbm %s23, %s2542
          %s2545 = sshll.u32 %s2535, 4
          %s2546 = int_to_ptr.vmem [resolvable:$true] %s2545
          %2548 = dma.vmem_to_hbm [thread:$0]  %s2546, 16, %s2543, %s2533
        $region124: #{vit_forward.1} parent=111 // pred_fallthru
          _
      $region112: #{vit_forward.1} parent=5 // pred_fallthru
        _
      %p2549 = scmp.le.s32.totalorder 2, %s32
      // Predicated region
      $region125: #{vit_forward.1} parent=5 // pred_check
        %p2550 = pneg %p2549
      $region126: #{vit_forward.1} parent=5 // pred_check_branch
        %2552 = sbr.rel (%p2550) target = $region128
      $region127: #{vit_forward.1} parent=5 // pred_region
        %s2553 = ssub.s32 %s32, 2
        // Predicated region
        $region129: #{vit_forward.1} parent=127 // pred_check
          %p2554 = pneg %p621
        $region130: #{vit_forward.1} parent=127 // pred_check_branch
          %2556 = sbr.rel (%p2554) target = $region132
        $region131: #{vit_forward.1} parent=127 // pred_region
          %s2557 = sand.u32 %s606, 1
          %s2558 = scalar_lea.sflag [#allocation4], %s2557
          %s2559 = sand.u32 %s606, 1
          %s2560 = scalar_lea.vmem [#allocation3], %s2559
          %2561 = dma.done %s2558, 16
        $region132: #{vit_forward.1} parent=127 // pred_fallthru
          _
      $region128: #{vit_forward.1} parent=5 // pred_fallthru
        _
    $region6: #{vit_forward.1} parent=1 // loop_footer
      %s36 = sadd.s32 1, %s32
    $region7: #{vit_forward.1} parent=1 // loop_footer_branch
      %31 = sbr.rel target = $region3
    $region8: #{vit_forward.1} parent=1 // loop_exit
      _
    %2562 = vsyncpa [#allocation4], 1
    %s2563 = scalar_lea.sflag [#allocation4], 1
    %2564 = vsyncpa %s2563, 1

</llo_original>
